<compile_context>
chip_gen: v7x
topology: tpu7x:2x2x1
jax: 0.10.0
libtpu: 0.0.40
codegen_flags: <defaults>
</compile_context>

<pallas_src>
import functools
import math

import jax
import jax.numpy as jnp
from jax import lax
from jax.experimental import pallas as pl
from jax.experimental.pallas import tpu as pltpu

LATENT = 32
HIDDEN = 4 * LATENT          # model == 'combine' -> latent * 4
MSIZE = 2                    # attention == 'multiple' -> msize = args.msize
STD = 0.1
TOUCH_IN = 3
GAZE_IN = 4


# ---------------------------------------------------------------------------
# Fused forward kernel
# ---------------------------------------------------------------------------
def _fused_forward_kernel(x_ref, l_ref, eps_ref, state_ref,
                          wih_ref, whh_ref, bias_ref, wenc_ref, benc_ref,
                          wh_ref, wg_ref, bcore_ref,
                          wloc_ref, bloc_ref, wa1_ref, ba1_ref, wa2_ref,
                          ba2_ref, logpi_ref, a_ref, *, std):
    B = state_ref.shape[0]
    TB = x_ref.shape[0]
    T = TB // B
    L2 = whh_ref.shape[0]          # combined hidden = 2 * latent (touch|gaze)
    G = whh_ref.shape[1]           # 8 * latent (combined gates)
    LQ = G // 4                    # width of one combined gate = 2 * latent
    msize = l_ref.shape[1]

    # ---- hoisted input projection: ONE matmul for all T time steps --------
    xproj = (jnp.dot(x_ref[...], wih_ref[...],
                     preferred_element_type=jnp.float32)
             + bias_ref[...])                                    # (T*B, G)

    # ---- attention weights (depend only on l, hoisted before the loop) ----
    lvals = l_ref[...]                                           # (B, msize)
    idx = jnp.clip((lvals * T).astype(jnp.int32), 0, T - 1)      # clamp: no OOB
    t_iota = lax.broadcasted_iota(jnp.int32, (T, B, msize), 0)
    w_attn = (jnp.sum((t_iota == idx[None, :, :]).astype(jnp.float32),
                      axis=2, keepdims=True)
              * (1.0 / msize))                                   # (T, B, 1)

    # ---- fused block-diagonal touch+gaze LSTM recurrence (fully unrolled) -
    whh = whh_ref[...]
    h = jnp.zeros((B, L2), jnp.float32)
    c = jnp.zeros((B, L2), jnp.float32)
    mean_acc = jnp.zeros((B, L2), jnp.float32)
    attn_acc = jnp.zeros((B, L2), jnp.float32)
    for t in range(T):                                           # T static
        gates = xproj[t * B:(t + 1) * B, :] + jnp.dot(
            h, whh, preferred_element_type=jnp.float32)          # (B, G)
        sg = jax.nn.sigmoid(gates)                               # one EUP pass
        i = sg[:, 0 * LQ:1 * LQ]
        f = sg[:, 1 * LQ:2 * LQ]
        o = sg[:, 3 * LQ:4 * LQ]
        g = jnp.tanh(gates[:, 2 * LQ:3 * LQ])
        c = f * c + i * g
        h = o * jnp.tanh(c)
        rh = jax.nn.relu(h)
        mean_acc = mean_acc + rh
        attn_acc = attn_acc + w_attn[t] * rh

    # ---- encoder (ReLU -> Linear) applied only to the pooled tensors ------
    wenc = wenc_ref[...]
    benc = benc_ref[...]
    mean_emb = jnp.dot(mean_acc * (1.0 / T), wenc,
                       preferred_element_type=jnp.float32) + benc   # (B, L2)
    attn_emb = jnp.dot(attn_acc, wenc,
                       preferred_element_type=jnp.float32) + benc   # (B, L2)
    # layout: [touch_mean | gaze_mean | touch_attn | gaze_attn]; wg rows are
    # permuted at pack time to match.
    g_rep = jnp.concatenate([mean_emb, attn_emb], axis=-1)          # (B, 4L)

    # ---- CORE: relu(fc_h(state) + fc_g(g)) ---------------------------------
    new_state = jax.nn.relu(
        jnp.dot(state_ref[...], wh_ref[...],
                preferred_element_type=jnp.float32)
        + jnp.dot(g_rep, wg_ref[...], preferred_element_type=jnp.float32)
        + bcore_ref[...])

    # ---- LOCATION: tanh(fc(state)); Normal(mu, std) log_prob of sample ----
    l_mu = jnp.tanh(jnp.dot(new_state, wloc_ref[...],
                            preferred_element_type=jnp.float32)
                    + bloc_ref[...])
    l_samp = l_mu + std * eps_ref[...]
    logpi_ref[...] = (-((l_samp - l_mu) ** 2) / (2.0 * std * std)
                      - math.log(std) - 0.5 * math.log(2.0 * math.pi))

    # ---- ACTION: Linear(hidden, 32) -> Linear(32, 1) -----------------------
    hid = (jnp.dot(new_state, wa1_ref[...],
                   preferred_element_type=jnp.float32) + ba1_ref[...])
    a_ref[...] = (jnp.dot(hid, wa2_ref[...],
                          preferred_element_type=jnp.float32) + ba2_ref[...])


def fused_forward(x_cat, l, eps, state, packed, std=STD):
    B = state.shape[0]
    msize = l.shape[1]
    kernel = functools.partial(_fused_forward_kernel, std=std)
    n_in = 4 + len(packed)
    return pl.pallas_call(
        kernel,
        out_shape=(jax.ShapeDtypeStruct((B, msize), jnp.float32),
                   jax.ShapeDtypeStruct((B, 1), jnp.float32)),
        in_specs=[pl.BlockSpec(memory_space=pltpu.MemorySpace.VMEM)] * n_in,
        out_specs=(pl.BlockSpec(memory_space=pltpu.MemorySpace.VMEM),
                   pl.BlockSpec(memory_space=pltpu.MemorySpace.VMEM)),
    )(x_cat, l, eps, state, *packed)


# ---------------------------------------------------------------------------
# Full MODEL.forward wrapper
# ---------------------------------------------------------------------------
def model_forward(packed, touch_data, gaze_data, state, l, eps, std=STD):
    # touch_data: (B, T, 3), gaze_data: (B, T, 4) -- batch-first like PyTorch.
    B, T, _ = touch_data.shape
    touch_tm = jnp.transpose(touch_data, (1, 0, 2)).astype(jnp.float32)
    gaze_tm = jnp.transpose(gaze_data, (1, 0, 2)).astype(jnp.float32)
    x_cat = jnp.concatenate([touch_tm, gaze_tm],
                            axis=-1).reshape(T * B, TOUCH_IN + GAZE_IN)
    return fused_forward(x_cat, l.astype(jnp.float32),
                         eps.astype(jnp.float32),
                         state.astype(jnp.float32), packed, std)


# ---------------------------------------------------------------------------
# Deterministic parameter init (same shapes as the torch module)
# ---------------------------------------------------------------------------
def init_params(key, latent=LATENT, hidden=HIDDEN, msize=MSIZE):
    ks = jax.random.split(key, 11)

    def lin(k, fan_in, fan_out):
        kw, kb = jax.random.split(k)
        w = jax.random.normal(kw, (fan_out, fan_in), jnp.float32) * 0.1
        b = jax.random.normal(kb, (fan_out,), jnp.float32) * 0.1
        return w.T, b.reshape(1, fan_out)      # pre-transposed weight

    # touch branch
    t_wih, t_bih = lin(ks[0], TOUCH_IN, 4 * latent)
    t_whh, t_bhh = lin(ks[1], latent, 4 * latent)
    t_wenc, t_benc = lin(ks[2], latent, latent)
    touch = (t_wih, t_whh, t_bih + t_bhh, t_wenc, t_benc)

    # gaze branch
    g_wih, g_bih = lin(ks[3], GAZE_IN, 4 * latent)
    g_whh, g_bhh = lin(ks[4], latent, 4 * latent)
    g_wenc, g_benc = lin(ks[5], latent, latent)
    gaze = (g_wih, g_whh, g_bih + g_bhh, g_wenc, g_benc)

    # head (CORE / LOCATION / ACTION)
    wh, bh = lin(ks[6], hidden, hidden)
    wg, bg = lin(ks[7], hidden, hidden)
    wloc, bloc = lin(ks[8], hidden, msize)
    wa1, ba1 = lin(ks[9], hidden, 32)
    wa2, ba2 = lin(ks[10], 32, 1)
    head = (wh, bh, wg, bg, wloc, bloc, wa1, ba1, wa2, ba2)

    return {'touch': touch, 'gaze': gaze, 'head': head}


# ---------------------------------------------------------------------------
# Host-side packing into the fused block-diagonal layout
# ---------------------------------------------------------------------------
def pack_params(params, latent=LATENT):
    L = latent
    t_wih, t_whh, t_b, t_wenc, t_benc = params['touch']
    g_wih, g_whh, g_b, g_wenc, g_benc = params['gaze']
    wh, bh, wg, bg, wloc, bloc, wa1, ba1, wa2, ba2 = params['head']

    # combined gate column layout: [i_t, i_g, f_t, f_g, g_t, g_g, o_t, o_g]
    def interleave_gate_cols(wt, wgz):
        ft, fg = wt.shape[0], wgz.shape[0]
        out = jnp.zeros((ft + fg, 8 * L), jnp.float32)
        for k in range(4):
            out = out.at[:ft, (2 * k) * L:(2 * k + 1) * L].set(
                wt[:, k * L:(k + 1) * L])
            out = out.at[ft:, (2 * k + 1) * L:(2 * k + 2) * L].set(
                wgz[:, k * L:(k + 1) * L])
        return out

    wih_cat = interleave_gate_cols(t_wih, g_wih)          # (7, 8L)
    whh_cat = interleave_gate_cols(t_whh, g_whh)          # (2L, 8L) block-diag

    bias_cat = jnp.zeros((1, 8 * L), jnp.float32)
    for k in range(4):
        bias_cat = bias_cat.at[:, (2 * k) * L:(2 * k + 1) * L].set(
            t_b[:, k * L:(k + 1) * L])
        bias_cat = bias_cat.at[:, (2 * k + 1) * L:(2 * k + 2) * L].set(
            g_b[:, k * L:(k + 1) * L])

    wenc_bd = jnp.zeros((2 * L, 2 * L), jnp.float32)
    wenc_bd = wenc_bd.at[:L, :L].set(t_wenc).at[L:, L:].set(g_wenc)
    benc_cat = jnp.concatenate([t_benc, g_benc], axis=-1)  # (1, 2L)

    # kernel's g layout = [touch_mean, gaze_mean, touch_attn, gaze_attn];
    # original task_rep  = [touch_mean, touch_attn, gaze_mean, gaze_attn].
    wg_perm = jnp.concatenate(
        [wg[0:L], wg[2 * L:3 * L], wg[L:2 * L], wg[3 * L:4 * L]], axis=0)
    bcore = bh + bg

    return (wih_cat, whh_cat, bias_cat, wenc_bd, benc_cat,
            wh, wg_perm, bcore, wloc, bloc, wa1, ba1, wa2, ba2)


# ---------------------------------------------------------------------------
# Pure-JAX reference (unfused, for numerical check)
# ---------------------------------------------------------------------------
def reference_forward(params, touch, gaze, state, l, eps, std, msize):
    def lstm_enc_ref(x, wih_t, whh_t, bias, wenc_t, benc):
        B, T, _ = x.shape
        L = whh_t.shape[0]
        h = jnp.zeros((B, L), jnp.float32)
        c = jnp.zeros((B, L), jnp.float32)
        outs = []
        for t in range(T):
            gates = x[:, t, :] @ wih_t + h @ whh_t + bias
            i = jax.nn.sigmoid(gates[:, :L])
            f = jax.nn.sigmoid(gates[:, L:2 * L])
            g = jnp.tanh(gates[:, 2 * L:3 * L])
            o = jax.nn.sigmoid(gates[:, 3 * L:])
            c = f * c + i * g
            h = o * jnp.tanh(c)
            outs.append(jax.nn.relu(h) @ wenc_t + benc)
        return jnp.stack(outs, axis=1)                     # (B, T, L)

    touch_emb = lstm_enc_ref(touch, *params['touch'])
    gaze_emb = lstm_enc_ref(gaze, *params['gaze'])
    T = touch.shape[1]

    touch_mean = jnp.mean(touch_emb, axis=1)
    gaze_mean = jnp.mean(gaze_emb, axis=1)
    idx = (l * T).astype(jnp.int32)                        # (B, msize)
    touch_attn = jnp.mean(
        jnp.take_along_axis(touch_emb, idx[:, :, None], axis=1), axis=1)
    gaze_attn = jnp.mean(
        jnp.take_along_axis(gaze_emb, idx[:, :, None], axis=1), axis=1)
    task_rep = jnp.concatenate(
        [touch_mean, touch_attn, gaze_mean, gaze_attn], axis=-1)

    wh, bh, wg, bg, wloc, bloc, wa1, ba1, wa2, ba2 = params['head']
    new_state = jax.nn.relu(state @ wh + bh + task_rep @ wg + bg)
    l_mu = jnp.tanh(new_state @ wloc + bloc)
    l_samp = l_mu + std * eps
    logpi = (-((l_samp - l_mu) ** 2) / (2.0 * std * std)
             - math.log(std) - 0.5 * math.log(2.0 * math.pi))
    a = (new_state @ wa1 + ba1) @ wa2 + ba2
    return logpi, a


if __name__ == "__main__":
    key = jax.random.PRNGKey(0)
    kp, kt, kg, kl, ke = jax.random.split(key, 5)

    B, T = 2, 8
    params = init_params(kp)
    packed = pack_params(params)
    touch = jax.random.normal(kt, (B, T, TOUCH_IN), jnp.float32)
    gaze = jax.random.normal(kg, (B, T, GAZE_IN), jnp.float32)
    state = jnp.zeros((B, HIDDEN), jnp.float32)              # MODEL.initialize
    l = jax.random.uniform(kl, (B, MSIZE), jnp.float32)      # MODEL.initialize
    eps = jax.random.normal(ke, (B, MSIZE), jnp.float32)     # Normal noise
    # TODO(synk): torch Normal.sample() RNG is replaced by host-side eps ~ N(0,1).

    fwd = jax.jit(lambda pk, td, gd, st, ll, ep:
                  model_forward(pk, td, gd, st, ll, ep, STD))
    logpi, a = fwd(packed, touch, gaze, state, l, eps)
    jax.block_until_ready((logpi, a))

    ref_logpi, ref_a = reference_forward(params, touch, gaze, state, l, eps,
                                         STD, MSIZE)
    assert logpi.shape == (B, MSIZE) and a.shape == (B, 1)
    assert jnp.allclose(logpi, ref_logpi, atol=2e-3, rtol=2e-3)
    assert jnp.allclose(a, ref_a, atol=2e-3, rtol=2e-3)
    print("KERNEL_OK")
</pallas_src>

<mosaic_0001>
module attributes {stable_mosaic.version = 11 : i64} {
  func.func @_fused_forward_kernel(%arg0: memref<16x7xf32, #tpu.memory_space<vmem>>, %arg1: memref<2x2xf32, #tpu.memory_space<vmem>>, %arg2: memref<2x2xf32, #tpu.memory_space<vmem>>, %arg3: memref<2x128xf32, #tpu.memory_space<vmem>>, %arg4: memref<7x256xf32, #tpu.memory_space<vmem>>, %arg5: memref<64x256xf32, #tpu.memory_space<vmem>>, %arg6: memref<1x256xf32, #tpu.memory_space<vmem>>, %arg7: memref<64x64xf32, #tpu.memory_space<vmem>>, %arg8: memref<1x64xf32, #tpu.memory_space<vmem>>, %arg9: memref<128x128xf32, #tpu.memory_space<vmem>>, %arg10: memref<128x128xf32, #tpu.memory_space<vmem>>, %arg11: memref<1x128xf32, #tpu.memory_space<vmem>>, %arg12: memref<128x2xf32, #tpu.memory_space<vmem>>, %arg13: memref<1x2xf32, #tpu.memory_space<vmem>>, %arg14: memref<128x32xf32, #tpu.memory_space<vmem>>, %arg15: memref<1x32xf32, #tpu.memory_space<vmem>>, %arg16: memref<32x1xf32, #tpu.memory_space<vmem>>, %arg17: memref<1x1xf32, #tpu.memory_space<vmem>>, %arg18: memref<2x2xf32, #tpu.memory_space<vmem>>, %arg19: memref<2x1xf32, #tpu.memory_space<vmem>>) attributes {dimension_semantics = [], scalar_prefetch = 0 : i64, scratch_operands = 0 : i64, tpu.core_type = #tpu.core_type<tc>} {
    %c0 = arith.constant 0 : index
    %c0_0 = arith.constant 0 : index
    %0 = vector.load %arg0[%c0, %c0_0] : memref<16x7xf32, #tpu.memory_space<vmem>>, vector<16x7xf32>
    %c0_1 = arith.constant 0 : index
    %c0_2 = arith.constant 0 : index
    %1 = vector.load %arg4[%c0_1, %c0_2] : memref<7x256xf32, #tpu.memory_space<vmem>>, vector<7x256xf32>
    %cst = arith.constant dense<0.000000e+00> : vector<16x256xf32>
    %2 = tpu.matmul %0, %1, %cst {dimension_numbers = #tpu.dot_dimension_numbers<[1], [0], [0], [1], [0, 0, 1, 1], [], []>} : vector<16x7xf32>, vector<7x256xf32>, vector<16x256xf32> -> vector<16x256xf32>
    %c0_3 = arith.constant 0 : index
    %c0_4 = arith.constant 0 : index
    %3 = vector.load %arg6[%c0_3, %c0_4] : memref<1x256xf32, #tpu.memory_space<vmem>>, vector<1x256xf32>
    %4 = vector.broadcast %3 : vector<1x256xf32> to vector<16x256xf32>
    %5 = arith.addf %2, %4 : vector<16x256xf32>
    %c0_5 = arith.constant 0 : index
    %c0_6 = arith.constant 0 : index
    %6 = vector.load %arg1[%c0_5, %c0_6] : memref<2x2xf32, #tpu.memory_space<vmem>>, vector<2x2xf32>
    %cst_7 = arith.constant 8.000000e+00 : f32
    %7 = vector.broadcast %cst_7 : f32 to vector<2x2xf32>
    %8 = arith.mulf %6, %7 : vector<2x2xf32>
    %9 = arith.fptosi %8 : vector<2x2xf32> to vector<2x2xi32>
    %c0_i32 = arith.constant 0 : i32
    %c7_i32 = arith.constant 7 : i32
    %10 = vector.broadcast %c0_i32 : i32 to vector<2x2xi32>
    %11 = arith.maxsi %10, %9 : vector<2x2xi32>
    %12 = vector.broadcast %c7_i32 : i32 to vector<2x2xi32>
    %13 = arith.minsi %12, %11 : vector<2x2xi32>
    %14 = tpu.iota {dimensions = array<i32: 0>} : vector<8x2x2xi32>
    %15 = vector.shape_cast %13 : vector<2x2xi32> to vector<1x2x2xi32>
    %16 = vector.broadcast %15 : vector<1x2x2xi32> to vector<8x2x2xi32>
    %17 = arith.cmpi eq, %14, %16 : vector<8x2x2xi32>
    %18 = arith.extui %17 : vector<8x2x2xi1> to vector<8x2x2xi32>
    %19 = arith.sitofp %18 : vector<8x2x2xi32> to vector<8x2x2xf32>
    %cst_8 = arith.constant dense<0.000000e+00> : vector<8x2xf32>
    %20 = vector.multi_reduction <add>, %19, %cst_8 [2] : vector<8x2x2xf32> to vector<8x2xf32>
    %21 = vector.shape_cast %20 : vector<8x2xf32> to vector<8x2x1xf32>
    %cst_9 = arith.constant 5.000000e-01 : f32
    %22 = vector.broadcast %cst_9 : f32 to vector<8x2x1xf32>
    %23 = arith.mulf %21, %22 : vector<8x2x1xf32>
    %c0_10 = arith.constant 0 : index
    %c0_11 = arith.constant 0 : index
    %24 = vector.load %arg5[%c0_10, %c0_11] : memref<64x256xf32, #tpu.memory_space<vmem>>, vector<64x256xf32>
    %cst_12 = arith.constant 0.000000e+00 : f32
    %25 = vector.broadcast %cst_12 : f32 to vector<2x64xf32>
    %cst_13 = arith.constant 0.000000e+00 : f32
    %26 = vector.broadcast %cst_13 : f32 to vector<2x64xf32>
    %cst_14 = arith.constant 0.000000e+00 : f32
    %27 = vector.broadcast %cst_14 : f32 to vector<2x64xf32>
    %cst_15 = arith.constant 0.000000e+00 : f32
    %28 = vector.broadcast %cst_15 : f32 to vector<2x64xf32>
    %29 = vector.extract_strided_slice %5 {offsets = [0, 0], sizes = [2, 256], strides = [1, 1]} : vector<16x256xf32> to vector<2x256xf32>
    %cst_16 = arith.constant dense<0.000000e+00> : vector<2x256xf32>
    %30 = tpu.matmul %25, %24, %cst_16 {dimension_numbers = #tpu.dot_dimension_numbers<[1], [0], [0], [1], [0, 0, 1, 1], [], []>} : vector<2x64xf32>, vector<64x256xf32>, vector<2x256xf32> -> vector<2x256xf32>
    %31 = arith.addf %29, %30 : vector<2x256xf32>
    %32 = arith.negf %31 : vector<2x256xf32>
    %33 = math.exp %32 : vector<2x256xf32>
    %cst_17 = arith.constant 1.000000e+00 : f32
    %34 = vector.broadcast %cst_17 : f32 to vector<2x256xf32>
    %35 = arith.addf %34, %33 : vector<2x256xf32>
    %36 = arith.divf %34, %35 : vector<2x256xf32>
    %37 = vector.extract_strided_slice %36 {offsets = [0, 0], sizes = [2, 64], strides = [1, 1]} : vector<2x256xf32> to vector<2x64xf32>
    %38 = vector.extract_strided_slice %36 {offsets = [0, 64], sizes = [2, 64], strides = [1, 1]} : vector<2x256xf32> to vector<2x64xf32>
    %39 = vector.extract_strided_slice %36 {offsets = [0, 192], sizes = [2, 64], strides = [1, 1]} : vector<2x256xf32> to vector<2x64xf32>
    %40 = vector.extract_strided_slice %31 {offsets = [0, 128], sizes = [2, 64], strides = [1, 1]} : vector<2x256xf32> to vector<2x64xf32>
    %41 = math.tanh %40 : vector<2x64xf32>
    %42 = arith.mulf %38, %26 : vector<2x64xf32>
    %43 = arith.mulf %37, %41 : vector<2x64xf32>
    %44 = arith.addf %42, %43 : vector<2x64xf32>
    %45 = math.tanh %44 : vector<2x64xf32>
    %46 = arith.mulf %39, %45 : vector<2x64xf32>
    %cst_18 = arith.constant 0.000000e+00 : f32
    %47 = vector.broadcast %cst_18 : f32 to vector<2x64xf32>
    %48 = arith.maximumf %46, %47 : vector<2x64xf32>
    %49 = arith.addf %27, %48 : vector<2x64xf32>
    %50 = vector.extract_strided_slice %23 {offsets = [0, 0, 0], sizes = [1, 2, 1], strides = [1, 1, 1]} : vector<8x2x1xf32> to vector<1x2x1xf32>
    %51 = vector.shape_cast %50 : vector<1x2x1xf32> to vector<2x1xf32>
    %52 = vector.broadcast %51 : vector<2x1xf32> to vector<2x64xf32>
    %53 = arith.mulf %52, %48 : vector<2x64xf32>
    %54 = arith.addf %28, %53 : vector<2x64xf32>
    %55 = vector.extract_strided_slice %5 {offsets = [2, 0], sizes = [2, 256], strides = [1, 1]} : vector<16x256xf32> to vector<2x256xf32>
    %cst_19 = arith.constant dense<0.000000e+00> : vector<2x256xf32>
    %56 = tpu.matmul %46, %24, %cst_19 {dimension_numbers = #tpu.dot_dimension_numbers<[1], [0], [0], [1], [0, 0, 1, 1], [], []>} : vector<2x64xf32>, vector<64x256xf32>, vector<2x256xf32> -> vector<2x256xf32>
    %57 = arith.addf %55, %56 : vector<2x256xf32>
    %58 = arith.negf %57 : vector<2x256xf32>
    %59 = math.exp %58 : vector<2x256xf32>
    %cst_20 = arith.constant 1.000000e+00 : f32
    %60 = vector.broadcast %cst_20 : f32 to vector<2x256xf32>
    %61 = arith.addf %60, %59 : vector<2x256xf32>
    %62 = arith.divf %60, %61 : vector<2x256xf32>
    %63 = vector.extract_strided_slice %62 {offsets = [0, 0], sizes = [2, 64], strides = [1, 1]} : vector<2x256xf32> to vector<2x64xf32>
    %64 = vector.extract_strided_slice %62 {offsets = [0, 64], sizes = [2, 64], strides = [1, 1]} : vector<2x256xf32> to vector<2x64xf32>
    %65 = vector.extract_strided_slice %62 {offsets = [0, 192], sizes = [2, 64], strides = [1, 1]} : vector<2x256xf32> to vector<2x64xf32>
    %66 = vector.extract_strided_slice %57 {offsets = [0, 128], sizes = [2, 64], strides = [1, 1]} : vector<2x256xf32> to vector<2x64xf32>
    %67 = math.tanh %66 : vector<2x64xf32>
    %68 = arith.mulf %64, %44 : vector<2x64xf32>
    %69 = arith.mulf %63, %67 : vector<2x64xf32>
    %70 = arith.addf %68, %69 : vector<2x64xf32>
    %71 = math.tanh %70 : vector<2x64xf32>
    %72 = arith.mulf %65, %71 : vector<2x64xf32>
    %cst_21 = arith.constant 0.000000e+00 : f32
    %73 = vector.broadcast %cst_21 : f32 to vector<2x64xf32>
    %74 = arith.maximumf %72, %73 : vector<2x64xf32>
    %75 = arith.addf %49, %74 : vector<2x64xf32>
    %76 = vector.extract_strided_slice %23 {offsets = [1, 0, 0], sizes = [1, 2, 1], strides = [1, 1, 1]} : vector<8x2x1xf32> to vector<1x2x1xf32>
    %77 = vector.shape_cast %76 : vector<1x2x1xf32> to vector<2x1xf32>
    %78 = vector.broadcast %77 : vector<2x1xf32> to vector<2x64xf32>
    %79 = arith.mulf %78, %74 : vector<2x64xf32>
    %80 = arith.addf %54, %79 : vector<2x64xf32>
    %81 = vector.extract_strided_slice %5 {offsets = [4, 0], sizes = [2, 256], strides = [1, 1]} : vector<16x256xf32> to vector<2x256xf32>
    %cst_22 = arith.constant dense<0.000000e+00> : vector<2x256xf32>
    %82 = tpu.matmul %72, %24, %cst_22 {dimension_numbers = #tpu.dot_dimension_numbers<[1], [0], [0], [1], [0, 0, 1, 1], [], []>} : vector<2x64xf32>, vector<64x256xf32>, vector<2x256xf32> -> vector<2x256xf32>
    %83 = arith.addf %81, %82 : vector<2x256xf32>
    %84 = arith.negf %83 : vector<2x256xf32>
    %85 = math.exp %84 : vector<2x256xf32>
    %cst_23 = arith.constant 1.000000e+00 : f32
    %86 = vector.broadcast %cst_23 : f32 to vector<2x256xf32>
    %87 = arith.addf %86, %85 : vector<2x256xf32>
    %88 = arith.divf %86, %87 : vector<2x256xf32>
    %89 = vector.extract_strided_slice %88 {offsets = [0, 0], sizes = [2, 64], strides = [1, 1]} : vector<2x256xf32> to vector<2x64xf32>
    %90 = vector.extract_strided_slice %88 {offsets = [0, 64], sizes = [2, 64], strides = [1, 1]} : vector<2x256xf32> to vector<2x64xf32>
    %91 = vector.extract_strided_slice %88 {offsets = [0, 192], sizes = [2, 64], strides = [1, 1]} : vector<2x256xf32> to vector<2x64xf32>
    %92 = vector.extract_strided_slice %83 {offsets = [0, 128], sizes = [2, 64], strides = [1, 1]} : vector<2x256xf32> to vector<2x64xf32>
    %93 = math.tanh %92 : vector<2x64xf32>
    %94 = arith.mulf %90, %70 : vector<2x64xf32>
    %95 = arith.mulf %89, %93 : vector<2x64xf32>
    %96 = arith.addf %94, %95 : vector<2x64xf32>
    %97 = math.tanh %96 : vector<2x64xf32>
    %98 = arith.mulf %91, %97 : vector<2x64xf32>
    %cst_24 = arith.constant 0.000000e+00 : f32
    %99 = vector.broadcast %cst_24 : f32 to vector<2x64xf32>
    %100 = arith.maximumf %98, %99 : vector<2x64xf32>
    %101 = arith.addf %75, %100 : vector<2x64xf32>
    %102 = vector.extract_strided_slice %23 {offsets = [2, 0, 0], sizes = [1, 2, 1], strides = [1, 1, 1]} : vector<8x2x1xf32> to vector<1x2x1xf32>
    %103 = vector.shape_cast %102 : vector<1x2x1xf32> to vector<2x1xf32>
    %104 = vector.broadcast %103 : vector<2x1xf32> to vector<2x64xf32>
    %105 = arith.mulf %104, %100 : vector<2x64xf32>
    %106 = arith.addf %80, %105 : vector<2x64xf32>
    %107 = vector.extract_strided_slice %5 {offsets = [6, 0], sizes = [2, 256], strides = [1, 1]} : vector<16x256xf32> to vector<2x256xf32>
    %cst_25 = arith.constant dense<0.000000e+00> : vector<2x256xf32>
    %108 = tpu.matmul %98, %24, %cst_25 {dimension_numbers = #tpu.dot_dimension_numbers<[1], [0], [0], [1], [0, 0, 1, 1], [], []>} : vector<2x64xf32>, vector<64x256xf32>, vector<2x256xf32> -> vector<2x256xf32>
    %109 = arith.addf %107, %108 : vector<2x256xf32>
    %110 = arith.negf %109 : vector<2x256xf32>
    %111 = math.exp %110 : vector<2x256xf32>
    %cst_26 = arith.constant 1.000000e+00 : f32
    %112 = vector.broadcast %cst_26 : f32 to vector<2x256xf32>
    %113 = arith.addf %112, %111 : vector<2x256xf32>
    %114 = arith.divf %112, %113 : vector<2x256xf32>
    %115 = vector.extract_strided_slice %114 {offsets = [0, 0], sizes = [2, 64], strides = [1, 1]} : vector<2x256xf32> to vector<2x64xf32>
    %116 = vector.extract_strided_slice %114 {offsets = [0, 64], sizes = [2, 64], strides = [1, 1]} : vector<2x256xf32> to vector<2x64xf32>
    %117 = vector.extract_strided_slice %114 {offsets = [0, 192], sizes = [2, 64], strides = [1, 1]} : vector<2x256xf32> to vector<2x64xf32>
    %118 = vector.extract_strided_slice %109 {offsets = [0, 128], sizes = [2, 64], strides = [1, 1]} : vector<2x256xf32> to vector<2x64xf32>
    %119 = math.tanh %118 : vector<2x64xf32>
    %120 = arith.mulf %116, %96 : vector<2x64xf32>
    %121 = arith.mulf %115, %119 : vector<2x64xf32>
    %122 = arith.addf %120, %121 : vector<2x64xf32>
    %123 = math.tanh %122 : vector<2x64xf32>
    %124 = arith.mulf %117, %123 : vector<2x64xf32>
    %cst_27 = arith.constant 0.000000e+00 : f32
    %125 = vector.broadcast %cst_27 : f32 to vector<2x64xf32>
    %126 = arith.maximumf %124, %125 : vector<2x64xf32>
    %127 = arith.addf %101, %126 : vector<2x64xf32>
    %128 = vector.extract_strided_slice %23 {offsets = [3, 0, 0], sizes = [1, 2, 1], strides = [1, 1, 1]} : vector<8x2x1xf32> to vector<1x2x1xf32>
    %129 = vector.shape_cast %128 : vector<1x2x1xf32> to vector<2x1xf32>
    %130 = vector.broadcast %129 : vector<2x1xf32> to vector<2x64xf32>
    %131 = arith.mulf %130, %126 : vector<2x64xf32>
    %132 = arith.addf %106, %131 : vector<2x64xf32>
    %133 = vector.extract_strided_slice %5 {offsets = [8, 0], sizes = [2, 256], strides = [1, 1]} : vector<16x256xf32> to vector<2x256xf32>
    %cst_28 = arith.constant dense<0.000000e+00> : vector<2x256xf32>
    %134 = tpu.matmul %124, %24, %cst_28 {dimension_numbers = #tpu.dot_dimension_numbers<[1], [0], [0], [1], [0, 0, 1, 1], [], []>} : vector<2x64xf32>, vector<64x256xf32>, vector<2x256xf32> -> vector<2x256xf32>
    %135 = arith.addf %133, %134 : vector<2x256xf32>
    %136 = arith.negf %135 : vector<2x256xf32>
    %137 = math.exp %136 : vector<2x256xf32>
    %cst_29 = arith.constant 1.000000e+00 : f32
    %138 = vector.broadcast %cst_29 : f32 to vector<2x256xf32>
    %139 = arith.addf %138, %137 : vector<2x256xf32>
    %140 = arith.divf %138, %139 : vector<2x256xf32>
    %141 = vector.extract_strided_slice %140 {offsets = [0, 0], sizes = [2, 64], strides = [1, 1]} : vector<2x256xf32> to vector<2x64xf32>
    %142 = vector.extract_strided_slice %140 {offsets = [0, 64], sizes = [2, 64], strides = [1, 1]} : vector<2x256xf32> to vector<2x64xf32>
    %143 = vector.extract_strided_slice %140 {offsets = [0, 192], sizes = [2, 64], strides = [1, 1]} : vector<2x256xf32> to vector<2x64xf32>
    %144 = vector.extract_strided_slice %135 {offsets = [0, 128], sizes = [2, 64], strides = [1, 1]} : vector<2x256xf32> to vector<2x64xf32>
    %145 = math.tanh %144 : vector<2x64xf32>
    %146 = arith.mulf %142, %122 : vector<2x64xf32>
    %147 = arith.mulf %141, %145 : vector<2x64xf32>
    %148 = arith.addf %146, %147 : vector<2x64xf32>
    %149 = math.tanh %148 : vector<2x64xf32>
    %150 = arith.mulf %143, %149 : vector<2x64xf32>
    %cst_30 = arith.constant 0.000000e+00 : f32
    %151 = vector.broadcast %cst_30 : f32 to vector<2x64xf32>
    %152 = arith.maximumf %150, %151 : vector<2x64xf32>
    %153 = arith.addf %127, %152 : vector<2x64xf32>
    %154 = vector.extract_strided_slice %23 {offsets = [4, 0, 0], sizes = [1, 2, 1], strides = [1, 1, 1]} : vector<8x2x1xf32> to vector<1x2x1xf32>
    %155 = vector.shape_cast %154 : vector<1x2x1xf32> to vector<2x1xf32>
    %156 = vector.broadcast %155 : vector<2x1xf32> to vector<2x64xf32>
    %157 = arith.mulf %156, %152 : vector<2x64xf32>
    %158 = arith.addf %132, %157 : vector<2x64xf32>
    %159 = vector.extract_strided_slice %5 {offsets = [10, 0], sizes = [2, 256], strides = [1, 1]} : vector<16x256xf32> to vector<2x256xf32>
    %cst_31 = arith.constant dense<0.000000e+00> : vector<2x256xf32>
    %160 = tpu.matmul %150, %24, %cst_31 {dimension_numbers = #tpu.dot_dimension_numbers<[1], [0], [0], [1], [0, 0, 1, 1], [], []>} : vector<2x64xf32>, vector<64x256xf32>, vector<2x256xf32> -> vector<2x256xf32>
    %161 = arith.addf %159, %160 : vector<2x256xf32>
    %162 = arith.negf %161 : vector<2x256xf32>
    %163 = math.exp %162 : vector<2x256xf32>
    %cst_32 = arith.constant 1.000000e+00 : f32
    %164 = vector.broadcast %cst_32 : f32 to vector<2x256xf32>
    %165 = arith.addf %164, %163 : vector<2x256xf32>
    %166 = arith.divf %164, %165 : vector<2x256xf32>
    %167 = vector.extract_strided_slice %166 {offsets = [0, 0], sizes = [2, 64], strides = [1, 1]} : vector<2x256xf32> to vector<2x64xf32>
    %168 = vector.extract_strided_slice %166 {offsets = [0, 64], sizes = [2, 64], strides = [1, 1]} : vector<2x256xf32> to vector<2x64xf32>
    %169 = vector.extract_strided_slice %166 {offsets = [0, 192], sizes = [2, 64], strides = [1, 1]} : vector<2x256xf32> to vector<2x64xf32>
    %170 = vector.extract_strided_slice %161 {offsets = [0, 128], sizes = [2, 64], strides = [1, 1]} : vector<2x256xf32> to vector<2x64xf32>
    %171 = math.tanh %170 : vector<2x64xf32>
    %172 = arith.mulf %168, %148 : vector<2x64xf32>
    %173 = arith.mulf %167, %171 : vector<2x64xf32>
    %174 = arith.addf %172, %173 : vector<2x64xf32>
    %175 = math.tanh %174 : vector<2x64xf32>
    %176 = arith.mulf %169, %175 : vector<2x64xf32>
    %cst_33 = arith.constant 0.000000e+00 : f32
    %177 = vector.broadcast %cst_33 : f32 to vector<2x64xf32>
    %178 = arith.maximumf %176, %177 : vector<2x64xf32>
    %179 = arith.addf %153, %178 : vector<2x64xf32>
    %180 = vector.extract_strided_slice %23 {offsets = [5, 0, 0], sizes = [1, 2, 1], strides = [1, 1, 1]} : vector<8x2x1xf32> to vector<1x2x1xf32>
    %181 = vector.shape_cast %180 : vector<1x2x1xf32> to vector<2x1xf32>
    %182 = vector.broadcast %181 : vector<2x1xf32> to vector<2x64xf32>
    %183 = arith.mulf %182, %178 : vector<2x64xf32>
    %184 = arith.addf %158, %183 : vector<2x64xf32>
    %185 = vector.extract_strided_slice %5 {offsets = [12, 0], sizes = [2, 256], strides = [1, 1]} : vector<16x256xf32> to vector<2x256xf32>
    %cst_34 = arith.constant dense<0.000000e+00> : vector<2x256xf32>
    %186 = tpu.matmul %176, %24, %cst_34 {dimension_numbers = #tpu.dot_dimension_numbers<[1], [0], [0], [1], [0, 0, 1, 1], [], []>} : vector<2x64xf32>, vector<64x256xf32>, vector<2x256xf32> -> vector<2x256xf32>
    %187 = arith.addf %185, %186 : vector<2x256xf32>
    %188 = arith.negf %187 : vector<2x256xf32>
    %189 = math.exp %188 : vector<2x256xf32>
    %cst_35 = arith.constant 1.000000e+00 : f32
    %190 = vector.broadcast %cst_35 : f32 to vector<2x256xf32>
    %191 = arith.addf %190, %189 : vector<2x256xf32>
    %192 = arith.divf %190, %191 : vector<2x256xf32>
    %193 = vector.extract_strided_slice %192 {offsets = [0, 0], sizes = [2, 64], strides = [1, 1]} : vector<2x256xf32> to vector<2x64xf32>
    %194 = vector.extract_strided_slice %192 {offsets = [0, 64], sizes = [2, 64], strides = [1, 1]} : vector<2x256xf32> to vector<2x64xf32>
    %195 = vector.extract_strided_slice %192 {offsets = [0, 192], sizes = [2, 64], strides = [1, 1]} : vector<2x256xf32> to vector<2x64xf32>
    %196 = vector.extract_strided_slice %187 {offsets = [0, 128], sizes = [2, 64], strides = [1, 1]} : vector<2x256xf32> to vector<2x64xf32>
    %197 = math.tanh %196 : vector<2x64xf32>
    %198 = arith.mulf %194, %174 : vector<2x64xf32>
    %199 = arith.mulf %193, %197 : vector<2x64xf32>
    %200 = arith.addf %198, %199 : vector<2x64xf32>
    %201 = math.tanh %200 : vector<2x64xf32>
    %202 = arith.mulf %195, %201 : vector<2x64xf32>
    %cst_36 = arith.constant 0.000000e+00 : f32
    %203 = vector.broadcast %cst_36 : f32 to vector<2x64xf32>
    %204 = arith.maximumf %202, %203 : vector<2x64xf32>
    %205 = arith.addf %179, %204 : vector<2x64xf32>
    %206 = vector.extract_strided_slice %23 {offsets = [6, 0, 0], sizes = [1, 2, 1], strides = [1, 1, 1]} : vector<8x2x1xf32> to vector<1x2x1xf32>
    %207 = vector.shape_cast %206 : vector<1x2x1xf32> to vector<2x1xf32>
    %208 = vector.broadcast %207 : vector<2x1xf32> to vector<2x64xf32>
    %209 = arith.mulf %208, %204 : vector<2x64xf32>
    %210 = arith.addf %184, %209 : vector<2x64xf32>
    %211 = vector.extract_strided_slice %5 {offsets = [14, 0], sizes = [2, 256], strides = [1, 1]} : vector<16x256xf32> to vector<2x256xf32>
    %cst_37 = arith.constant dense<0.000000e+00> : vector<2x256xf32>
    %212 = tpu.matmul %202, %24, %cst_37 {dimension_numbers = #tpu.dot_dimension_numbers<[1], [0], [0], [1], [0, 0, 1, 1], [], []>} : vector<2x64xf32>, vector<64x256xf32>, vector<2x256xf32> -> vector<2x256xf32>
    %213 = arith.addf %211, %212 : vector<2x256xf32>
    %214 = arith.negf %213 : vector<2x256xf32>
    %215 = math.exp %214 : vector<2x256xf32>
    %cst_38 = arith.constant 1.000000e+00 : f32
    %216 = vector.broadcast %cst_38 : f32 to vector<2x256xf32>
    %217 = arith.addf %216, %215 : vector<2x256xf32>
    %218 = arith.divf %216, %217 : vector<2x256xf32>
    %219 = vector.extract_strided_slice %218 {offsets = [0, 0], sizes = [2, 64], strides = [1, 1]} : vector<2x256xf32> to vector<2x64xf32>
    %220 = vector.extract_strided_slice %218 {offsets = [0, 64], sizes = [2, 64], strides = [1, 1]} : vector<2x256xf32> to vector<2x64xf32>
    %221 = vector.extract_strided_slice %218 {offsets = [0, 192], sizes = [2, 64], strides = [1, 1]} : vector<2x256xf32> to vector<2x64xf32>
    %222 = vector.extract_strided_slice %213 {offsets = [0, 128], sizes = [2, 64], strides = [1, 1]} : vector<2x256xf32> to vector<2x64xf32>
    %223 = math.tanh %222 : vector<2x64xf32>
    %224 = arith.mulf %220, %200 : vector<2x64xf32>
    %225 = arith.mulf %219, %223 : vector<2x64xf32>
    %226 = arith.addf %224, %225 : vector<2x64xf32>
    %227 = math.tanh %226 : vector<2x64xf32>
    %228 = arith.mulf %221, %227 : vector<2x64xf32>
    %cst_39 = arith.constant 0.000000e+00 : f32
    %229 = vector.broadcast %cst_39 : f32 to vector<2x64xf32>
    %230 = arith.maximumf %228, %229 : vector<2x64xf32>
    %231 = arith.addf %205, %230 : vector<2x64xf32>
    %232 = vector.extract_strided_slice %23 {offsets = [7, 0, 0], sizes = [1, 2, 1], strides = [1, 1, 1]} : vector<8x2x1xf32> to vector<1x2x1xf32>
    %233 = vector.shape_cast %232 : vector<1x2x1xf32> to vector<2x1xf32>
    %234 = vector.broadcast %233 : vector<2x1xf32> to vector<2x64xf32>
    %235 = arith.mulf %234, %230 : vector<2x64xf32>
    %236 = arith.addf %210, %235 : vector<2x64xf32>
    %c0_40 = arith.constant 0 : index
    %c0_41 = arith.constant 0 : index
    %237 = vector.load %arg7[%c0_40, %c0_41] : memref<64x64xf32, #tpu.memory_space<vmem>>, vector<64x64xf32>
    %c0_42 = arith.constant 0 : index
    %c0_43 = arith.constant 0 : index
    %238 = vector.load %arg8[%c0_42, %c0_43] : memref<1x64xf32, #tpu.memory_space<vmem>>, vector<1x64xf32>
    %cst_44 = arith.constant 1.250000e-01 : f32
    %239 = vector.broadcast %cst_44 : f32 to vector<2x64xf32>
    %240 = arith.mulf %231, %239 : vector<2x64xf32>
    %cst_45 = arith.constant dense<0.000000e+00> : vector<2x64xf32>
    %241 = tpu.matmul %240, %237, %cst_45 {dimension_numbers = #tpu.dot_dimension_numbers<[1], [0], [0], [1], [0, 0, 1, 1], [], []>} : vector<2x64xf32>, vector<64x64xf32>, vector<2x64xf32> -> vector<2x64xf32>
    %242 = vector.broadcast %238 : vector<1x64xf32> to vector<2x64xf32>
    %243 = arith.addf %241, %242 : vector<2x64xf32>
    %cst_46 = arith.constant dense<0.000000e+00> : vector<2x64xf32>
    %244 = tpu.matmul %236, %237, %cst_46 {dimension_numbers = #tpu.dot_dimension_numbers<[1], [0], [0], [1], [0, 0, 1, 1], [], []>} : vector<2x64xf32>, vector<64x64xf32>, vector<2x64xf32> -> vector<2x64xf32>
    %245 = vector.broadcast %238 : vector<1x64xf32> to vector<2x64xf32>
    %246 = arith.addf %244, %245 : vector<2x64xf32>
    %247 = tpu.concatenate %243, %246 in 1 : vector<2x64xf32>, vector<2x64xf32> -> vector<2x128xf32>
    %c0_47 = arith.constant 0 : index
    %c0_48 = arith.constant 0 : index
    %248 = vector.load %arg3[%c0_47, %c0_48] : memref<2x128xf32, #tpu.memory_space<vmem>>, vector<2x128xf32>
    %c0_49 = arith.constant 0 : index
    %c0_50 = arith.constant 0 : index
    %249 = vector.load %arg9[%c0_49, %c0_50] : memref<128x128xf32, #tpu.memory_space<vmem>>, vector<128x128xf32>
    %cst_51 = arith.constant dense<0.000000e+00> : vector<2x128xf32>
    %250 = tpu.matmul %248, %249, %cst_51 {dimension_numbers = #tpu.dot_dimension_numbers<[1], [0], [0], [1], [0, 0, 1, 1], [], []>} : vector<2x128xf32>, vector<128x128xf32>, vector<2x128xf32> -> vector<2x128xf32>
    %c0_52 = arith.constant 0 : index
    %c0_53 = arith.constant 0 : index
    %251 = vector.load %arg10[%c0_52, %c0_53] : memref<128x128xf32, #tpu.memory_space<vmem>>, vector<128x128xf32>
    %cst_54 = arith.constant dense<0.000000e+00> : vector<2x128xf32>
    %252 = tpu.matmul %247, %251, %cst_54 {dimension_numbers = #tpu.dot_dimension_numbers<[1], [0], [0], [1], [0, 0, 1, 1], [], []>} : vector<2x128xf32>, vector<128x128xf32>, vector<2x128xf32> -> vector<2x128xf32>
    %253 = arith.addf %250, %252 : vector<2x128xf32>
    %c0_55 = arith.constant 0 : index
    %c0_56 = arith.constant 0 : index
    %254 = vector.load %arg11[%c0_55, %c0_56] : memref<1x128xf32, #tpu.memory_space<vmem>>, vector<1x128xf32>
    %255 = vector.broadcast %254 : vector<1x128xf32> to vector<2x128xf32>
    %256 = arith.addf %253, %255 : vector<2x128xf32>
    %cst_57 = arith.constant 0.000000e+00 : f32
    %257 = vector.broadcast %cst_57 : f32 to vector<2x128xf32>
    %258 = arith.maximumf %256, %257 : vector<2x128xf32>
    %c0_58 = arith.constant 0 : index
    %c0_59 = arith.constant 0 : index
    %259 = vector.load %arg12[%c0_58, %c0_59] : memref<128x2xf32, #tpu.memory_space<vmem>>, vector<128x2xf32>
    %cst_60 = arith.constant dense<0.000000e+00> : vector<2x2xf32>
    %260 = tpu.matmul %258, %259, %cst_60 {dimension_numbers = #tpu.dot_dimension_numbers<[1], [0], [0], [1], [0, 0, 1, 1], [], []>} : vector<2x128xf32>, vector<128x2xf32>, vector<2x2xf32> -> vector<2x2xf32>
    %c0_61 = arith.constant 0 : index
    %c0_62 = arith.constant 0 : index
    %261 = vector.load %arg13[%c0_61, %c0_62] : memref<1x2xf32, #tpu.memory_space<vmem>>, vector<1x2xf32>
    %262 = vector.broadcast %261 : vector<1x2xf32> to vector<2x2xf32>
    %263 = arith.addf %260, %262 : vector<2x2xf32>
    %264 = math.tanh %263 : vector<2x2xf32>
    %c0_63 = arith.constant 0 : index
    %c0_64 = arith.constant 0 : index
    %265 = vector.load %arg2[%c0_63, %c0_64] : memref<2x2xf32, #tpu.memory_space<vmem>>, vector<2x2xf32>
    %cst_65 = arith.constant 1.000000e-01 : f32
    %266 = vector.broadcast %cst_65 : f32 to vector<2x2xf32>
    %267 = arith.mulf %266, %265 : vector<2x2xf32>
    %268 = arith.addf %264, %267 : vector<2x2xf32>
    %269 = arith.subf %268, %264 : vector<2x2xf32>
    %270 = arith.mulf %269, %269 : vector<2x2xf32>
    %cst_66 = arith.constant 0.000000e+00 : f32
    %271 = vector.broadcast %cst_66 : f32 to vector<2x2xf32>
    %272 = arith.subf %271, %270 : vector<2x2xf32>
    %cst_67 = arith.constant 2.000000e-02 : f32
    %273 = vector.broadcast %cst_67 : f32 to vector<2x2xf32>
    %274 = arith.divf %272, %273 : vector<2x2xf32>
    %cst_68 = arith.constant -2.30258512 : f32
    %275 = vector.broadcast %cst_68 : f32 to vector<2x2xf32>
    %276 = arith.subf %274, %275 : vector<2x2xf32>
    %cst_69 = arith.constant 0.918938517 : f32
    %277 = vector.broadcast %cst_69 : f32 to vector<2x2xf32>
    %278 = arith.subf %276, %277 : vector<2x2xf32>
    %c0_70 = arith.constant 0 : index
    %c0_71 = arith.constant 0 : index
    %279 = vector.load %arg18[%c0_70, %c0_71] : memref<2x2xf32, #tpu.memory_space<vmem>>, vector<2x2xf32>
    tpu.vector_store %arg18[%c0_70, %c0_71], %278 {strides = array<i32>} : memref<2x2xf32, #tpu.memory_space<vmem>>, vector<2x2xf32>,
    %c0_72 = arith.constant 0 : index
    %c0_73 = arith.constant 0 : index
    %280 = vector.load %arg14[%c0_72, %c0_73] : memref<128x32xf32, #tpu.memory_space<vmem>>, vector<128x32xf32>
    %cst_74 = arith.constant dense<0.000000e+00> : vector<2x32xf32>
    %281 = tpu.matmul %258, %280, %cst_74 {dimension_numbers = #tpu.dot_dimension_numbers<[1], [0], [0], [1], [0, 0, 1, 1], [], []>} : vector<2x128xf32>, vector<128x32xf32>, vector<2x32xf32> -> vector<2x32xf32>
    %c0_75 = arith.constant 0 : index
    %c0_76 = arith.constant 0 : index
    %282 = vector.load %arg15[%c0_75, %c0_76] : memref<1x32xf32, #tpu.memory_space<vmem>>, vector<1x32xf32>
    %283 = vector.broadcast %282 : vector<1x32xf32> to vector<2x32xf32>
    %284 = arith.addf %281, %283 : vector<2x32xf32>
    %c0_77 = arith.constant 0 : index
    %c0_78 = arith.constant 0 : index
    %285 = vector.load %arg16[%c0_77, %c0_78] : memref<32x1xf32, #tpu.memory_space<vmem>>, vector<32x1xf32>
    %cst_79 = arith.constant dense<0.000000e+00> : vector<2x1xf32>
    %286 = tpu.matmul %284, %285, %cst_79 {dimension_numbers = #tpu.dot_dimension_numbers<[1], [0], [0], [1], [0, 0, 1, 1], [], []>} : vector<2x32xf32>, vector<32x1xf32>, vector<2x1xf32> -> vector<2x1xf32>
    %c0_80 = arith.constant 0 : index
    %c0_81 = arith.constant 0 : index
    %287 = vector.load %arg17[%c0_80, %c0_81] : memref<1x1xf32, #tpu.memory_space<vmem>>, vector<1x1xf32>
    %288 = vector.broadcast %287 : vector<1x1xf32> to vector<2x1xf32>
    %289 = arith.addf %286, %288 : vector<2x1xf32>
    %c0_82 = arith.constant 0 : index
    %c0_83 = arith.constant 0 : index
    %290 = vector.load %arg19[%c0_82, %c0_83] : memref<2x1xf32, #tpu.memory_space<vmem>>, vector<2x1xf32>
    tpu.vector_store %arg19[%c0_82, %c0_83], %289 {strides = array<i32>} : memref<2x1xf32, #tpu.memory_space<vmem>>, vector<2x1xf32>,
    return
  }
}

</mosaic_0001>

<llo_original>
// kernel: _lambda_.1
$region0: #{_lambda_.1}
  #allocation0 [shape = 'u32[]', space=smem, size = 0x4, offset = 0x4, fixed_abs, tag = 'smem constant byte address 0x4 - core index']
  #allocation1 [shape = 'u32[144,128]{1,0:T(1,128)}', space=vmem, size = 0x12000, scoped, tag = 'internal scratch']
  #allocation2 [shape = 'f32[1,1]{1,0:T(1,128)S(1)}', space=vmem, size = 0x200, scoped, tag = 'scoped memory for _lambda_.1']
  %s0 = inlined_call_operand.vmem [shape: f32[16,7], index: 0, kind: input, shape index: {}]
  %s1 = inlined_call_operand.vmem [shape: f32[2,2], index: 1, kind: input, shape index: {}]
  %s2 = inlined_call_operand.vmem [shape: f32[2,2], index: 2, kind: input, shape index: {}]
  %s3 = inlined_call_operand.vmem [shape: f32[2,128], index: 3, kind: input, shape index: {}]
  %s4 = inlined_call_operand.hbm [shape: f32[7,256], index: 4, kind: input, shape index: {}]
  %s5 = inlined_call_operand.vmem [shape: f32[64,256], index: 5, kind: input, shape index: {}]
  %s6 = inlined_call_operand.hbm [shape: f32[1,256], index: 6, kind: input, shape index: {}]
  %s7 = inlined_call_operand.hbm [shape: f32[64,64], index: 7, kind: input, shape index: {}]
  %s8 = inlined_call_operand.vmem [shape: f32[1,64], index: 8, kind: input, shape index: {}]
  %s9 = inlined_call_operand.vmem [shape: f32[128,128], index: 9, kind: input, shape index: {}]
  %s10 = inlined_call_operand.vmem [shape: f32[128,128], index: 10, kind: input, shape index: {}]
  %s11 = inlined_call_operand.hbm [shape: f32[1,128], index: 11, kind: input, shape index: {}]
  %s12 = inlined_call_operand.vmem [shape: f32[128,2], index: 12, kind: input, shape index: {}]
  %s13 = inlined_call_operand.vmem [shape: f32[1,2], index: 13, kind: input, shape index: {}]
  %s14 = inlined_call_operand.vmem [shape: f32[128,32], index: 14, kind: input, shape index: {}]
  %s15 = inlined_call_operand.vmem [shape: f32[1,32], index: 15, kind: input, shape index: {}]
  %s16 = inlined_call_operand.vmem [shape: f32[32,1], index: 16, kind: input, shape index: {}]
  %s17 = inlined_call_operand.<no memory space> [shape: f32[1,1], index: 17, kind: input, shape index: {}]
  %s18 = inlined_call_operand.hbm [shape: f32[2,2], index: 18, kind: output, shape index: {0}]
  %s19 = inlined_call_operand.vmem [shape: f32[2,1], index: 19, kind: output, shape index: {1}]
  %20 = xla_tuple %s18, %s19
  %s21 = sld [smem:[#allocation0]]
  $region106: #{_lambda_.1} parent=0
    _
  %s23 = ssub.s32 1, %s21
  %s24 = scalar_select 0, %s23, %s21
  %v25 = vstv %s17
  %26 = vst [vmem:[#allocation2] sm:$0x1] %v25
  $region1: #{_lambda_.1} parent=0
    #allocation3 [shape = 'u8[8192]{0}', space=vmem, size = 0x2000, scoped, tag = 'input window, operand 4, single buffered']
    #allocation4 [shape = 's32[1]{0}', space=sflag, size = 0x4, scoped, tag = 'scoped memory for _lambda_.1']
    #allocation5 [shape = 's32[1]{0}', space=sflag, size = 0x4, scoped, tag = 'scoped memory for _lambda_.1']
    #allocation6 [shape = 'u8[1024]{0}', space=vmem, size = 0x400, scoped, tag = 'input window, operand 6, single buffered']
    #allocation7 [shape = 's32[1]{0}', space=sflag, size = 0x4, scoped, tag = 'scoped memory for _lambda_.1']
    #allocation8 [shape = 'u8[32768]{0}', space=vmem, size = 0x8000, scoped, tag = 'input window, operand 7, single buffered']
    #allocation9 [shape = 'u8[512]{0}', space=vmem, size = 0x400, scoped, tag = 'input window, operand 11, single buffered']
    #allocation10 [shape = 's32[1]{0}', space=sflag, size = 0x4, scoped, tag = 'scoped memory for _lambda_.1']
    #allocation11 [shape = 'u8[1024]{0}', space=vmem, size = 0x400, scoped, tag = 'output window, operand 0, single buffered']
    %27 = vsyncpa [#allocation4], 0
    %28 = vsyncpa [#allocation7], 0
    %29 = vsyncpa [#allocation10], 0
    %30 = vsyncpa [#allocation5], 0
    // Predicated region
    $region2: #{_lambda_.1} parent=1 // pred_check
      _
    $region3: #{_lambda_.1} parent=1 // pred_check_branch
      %32 = sbr.rel (0) target = $region5
    $region4: #{_lambda_.1} parent=1 // pred_region
      _
    $region5: #{_lambda_.1} parent=1 // pred_fallthru
      _
    // Predicated region
    $region6: #{_lambda_.1} parent=1 // pred_check
      _
    $region7: #{_lambda_.1} parent=1 // pred_check_branch
      %34 = sbr.rel (0) target = $region9
    $region8: #{_lambda_.1} parent=1 // pred_region
      _
    $region9: #{_lambda_.1} parent=1 // pred_fallthru
      _
    // Predicated region
    $region10: #{_lambda_.1} parent=1 // pred_check
      _
    $region11: #{_lambda_.1} parent=1 // pred_check_branch
      %36 = sbr.rel (0) target = $region13
    $region12: #{_lambda_.1} parent=1 // pred_region
      _
    $region13: #{_lambda_.1} parent=1 // pred_fallthru
      _
    // Predicated region
    $region14: #{_lambda_.1} parent=1 // pred_check
      _
    $region15: #{_lambda_.1} parent=1 // pred_check_branch
      %38 = sbr.rel (0) target = $region17
    $region16: #{_lambda_.1} parent=1 // pred_region
      _
    $region17: #{_lambda_.1} parent=1 // pred_fallthru
      _
    // Predicated region
    $region18: #{_lambda_.1} parent=1 // pred_check
      _
    $region19: #{_lambda_.1} parent=1 // pred_check_branch
      %40 = sbr.rel (0) target = $region21
    $region20: #{_lambda_.1} parent=1 // pred_region
      %s42 = ssub.s32 256, 256
      %43 = vsyncadd [#allocation4], %s42
      %s45 = sshll.u32 [#allocation3], 4
      %s46 = int_to_ptr.vmem [resolvable:$true] %s45
      %48 = dma.hbm_to_vmem [thread:$0]  %s4, 256, %s46, [#allocation4]
    $region21: #{_lambda_.1} parent=1 // pred_fallthru
      _
    // Predicated region
    $region22: #{_lambda_.1} parent=1 // pred_check
      _
    $region23: #{_lambda_.1} parent=1 // pred_check_branch
      %50 = sbr.rel (0) target = $region25
    $region24: #{_lambda_.1} parent=1 // pred_region
      _
    $region25: #{_lambda_.1} parent=1 // pred_fallthru
      _
    // Predicated region
    $region26: #{_lambda_.1} parent=1 // pred_check
      _
    $region27: #{_lambda_.1} parent=1 // pred_check_branch
      %52 = sbr.rel (0) target = $region29
    $region28: #{_lambda_.1} parent=1 // pred_region
      %s54 = ssub.s32 32, 32
      %55 = vsyncadd [#allocation7], %s54
      %s57 = sshll.u32 [#allocation6], 4
      %s58 = int_to_ptr.vmem [resolvable:$true] %s57
      %60 = dma.hbm_to_vmem [thread:$0]  %s6, 32, %s58, [#allocation7]
    $region29: #{_lambda_.1} parent=1 // pred_fallthru
      _
    // Predicated region
    $region30: #{_lambda_.1} parent=1 // pred_check
      _
    $region31: #{_lambda_.1} parent=1 // pred_check_branch
      %62 = sbr.rel (0) target = $region33
    $region32: #{_lambda_.1} parent=1 // pred_region
      %s64 = ssub.s32 1024, 1024
      %65 = vsyncadd [#allocation7], %s64
      %s66 = sshll.u32 [#allocation8], 4
      %s67 = int_to_ptr.vmem [resolvable:$true] %s66
      %72 = dma.hbm_to_vmem [thread:$0]  %s7, 1024, %s67, [#allocation7], 128, 128, 8
    $region33: #{_lambda_.1} parent=1 // pred_fallthru
      _
    // Predicated region
    $region34: #{_lambda_.1} parent=1 // pred_check
      _
    $region35: #{_lambda_.1} parent=1 // pred_check_branch
      %74 = sbr.rel (0) target = $region37
    $region36: #{_lambda_.1} parent=1 // pred_region
      _
    $region37: #{_lambda_.1} parent=1 // pred_fallthru
      _
    // Predicated region
    $region38: #{_lambda_.1} parent=1 // pred_check
      _
    $region39: #{_lambda_.1} parent=1 // pred_check_branch
      %76 = sbr.rel (0) target = $region41
    $region40: #{_lambda_.1} parent=1 // pred_region
      _
    $region41: #{_lambda_.1} parent=1 // pred_fallthru
      _
    // Predicated region
    $region42: #{_lambda_.1} parent=1 // pred_check
      _
    $region43: #{_lambda_.1} parent=1 // pred_check_branch
      %78 = sbr.rel (0) target = $region45
    $region44: #{_lambda_.1} parent=1 // pred_region
      _
    $region45: #{_lambda_.1} parent=1 // pred_fallthru
      _
    // Predicated region
    $region46: #{_lambda_.1} parent=1 // pred_check
      _
    $region47: #{_lambda_.1} parent=1 // pred_check_branch
      %80 = sbr.rel (0) target = $region49
    $region48: #{_lambda_.1} parent=1 // pred_region
      %s82 = ssub.s32 16, 16
      %83 = vsyncadd [#allocation10], %s82
      %s85 = sshll.u32 [#allocation9], 4
      %s86 = int_to_ptr.vmem [resolvable:$true] %s85
      %88 = dma.hbm_to_vmem [thread:$0]  %s11, 16, %s86, [#allocation10]
    $region49: #{_lambda_.1} parent=1 // pred_fallthru
      _
    // Predicated region
    $region50: #{_lambda_.1} parent=1 // pred_check
      _
    $region51: #{_lambda_.1} parent=1 // pred_check_branch
      %90 = sbr.rel (0) target = $region53
    $region52: #{_lambda_.1} parent=1 // pred_region
      _
    $region53: #{_lambda_.1} parent=1 // pred_fallthru
      _
    // Predicated region
    $region54: #{_lambda_.1} parent=1 // pred_check
      _
    $region55: #{_lambda_.1} parent=1 // pred_check_branch
      %92 = sbr.rel (0) target = $region57
    $region56: #{_lambda_.1} parent=1 // pred_region
      _
    $region57: #{_lambda_.1} parent=1 // pred_fallthru
      _
    // Predicated region
    $region58: #{_lambda_.1} parent=1 // pred_check
      _
    $region59: #{_lambda_.1} parent=1 // pred_check_branch
      %94 = sbr.rel (0) target = $region61
    $region60: #{_lambda_.1} parent=1 // pred_region
      _
    $region61: #{_lambda_.1} parent=1 // pred_fallthru
      _
    // Predicated region
    $region62: #{_lambda_.1} parent=1 // pred_check
      _
    $region63: #{_lambda_.1} parent=1 // pred_check_branch
      %96 = sbr.rel (0) target = $region65
    $region64: #{_lambda_.1} parent=1 // pred_region
      _
    $region65: #{_lambda_.1} parent=1 // pred_fallthru
      _
    // Predicated region
    $region66: #{_lambda_.1} parent=1 // pred_check
      _
    $region67: #{_lambda_.1} parent=1 // pred_check_branch
      %98 = sbr.rel (0) target = $region69
    $region68: #{_lambda_.1} parent=1 // pred_region
      _
    $region69: #{_lambda_.1} parent=1 // pred_fallthru
      _
    // Predicated region
    $region70: #{_lambda_.1} parent=1 // pred_check
      _
    $region71: #{_lambda_.1} parent=1 // pred_check_branch
      %100 = sbr.rel (0) target = $region73
    $region72: #{_lambda_.1} parent=1 // pred_region
      _
    $region73: #{_lambda_.1} parent=1 // pred_fallthru
      _
    // Predicated region
    $region74: #{_lambda_.1} parent=1 // pred_check
      _
    $region75: #{_lambda_.1} parent=1 // pred_check_branch
      %102 = sbr.rel (0) target = $region77
    $region76: #{_lambda_.1} parent=1 // pred_region
      %103 = dma.done [#allocation4], 256
    $region77: #{_lambda_.1} parent=1 // pred_fallthru
      _
    // Predicated region
    $region78: #{_lambda_.1} parent=1 // pred_check
      _
    $region79: #{_lambda_.1} parent=1 // pred_check_branch
      %105 = sbr.rel (0) target = $region81
    $region80: #{_lambda_.1} parent=1 // pred_region
      %106 = dma.done [#allocation7], 32
    $region81: #{_lambda_.1} parent=1 // pred_fallthru
      _
    // Predicated region
    $region82: #{_lambda_.1} parent=1 // pred_check
      _
    $region83: #{_lambda_.1} parent=1 // pred_check_branch
      %108 = sbr.rel (0) target = $region85
    $region84: #{_lambda_.1} parent=1 // pred_region
      %109 = dma.done [#allocation7], 1024
    $region85: #{_lambda_.1} parent=1 // pred_fallthru
      _
    // Predicated region
    $region86: #{_lambda_.1} parent=1 // pred_check
      _
    $region87: #{_lambda_.1} parent=1 // pred_check_branch
      %111 = sbr.rel (0) target = $region89
    $region88: #{_lambda_.1} parent=1 // pred_region
      %112 = dma.done [#allocation10], 16
    $region89: #{_lambda_.1} parent=1 // pred_fallthru
      _
    %v113 = vld [vmem:[%s0] sm:$0xff]
    %v114 = vld [vmem:[%s0 + $0x8] sm:$0xff]
    %v115 = vld [vmem:[#allocation3] sm:$0x7f]
    %v116 = vld [vmem:[#allocation3 + $0x8] sm:$0x7f]
    %v117 = vld [vmem:[#allocation6] sm:$0x3]
    %v119 = vlaneseq
    %v120 = vshrl.u32 %v119, 7
    %v121 = vsub.s32 0, %v120
    %v122 = vrot.slane %v117, %v121
    %v123 = vlaneseq
    %v124 = vshrl.u32 %v123, 7
    %v125 = vsub.s32 1, %v124
    %v126 = vrot.slane %v117, %v125
    %vm129 = vcmask 56320
    %v131 = vsel %vm129, %v113, 0
    %v134 = vsel %vm129, %v114, 0
    %vm136 = vcmask 1046528
    %v138 = vsel %vm136, %v115, 0
    %v141 = vsel %vm136, %v116, 0
    %143 = vmatprep.subr.mxu0 %v141
    %144 = vmatpush1.msra.mxu0 %v138
    %145 = vmatprep.subr.mxu0 0.0
    %146 = vmatpush1.msra.mxu0 0.0
    %147 = vmatprep.subr.mxu0 0.0
    %148 = vmatpush1.msra.mxu0 0.0
    %149 = vmatprep.subr.mxu0 0.0
    %150 = vmatpush1.msra.mxu0 0.0
    %151 = vmatprep.subr.mxu0 0.0
    %152 = vmatpush1.msra.mxu0 0.0
    %153 = vmatprep.subr.mxu0 0.0
    %154 = vmatpush1.msra.mxu0 0.0
    %155 = vmatprep.subr.mxu0 0.0
    %156 = vmatpush1.msra.mxu0 0.0
    %157 = vmatprep.subr.mxu0 0.0
    %158 = vmatpush1.msra.mxu0 0.0
    %159 = vmatprep.subr.mxu0 0.0
    %160 = vmatpush1.msra.mxu0 0.0
    %161 = vmatprep.subr.mxu0 0.0
    %162 = vmatpush1.msra.mxu0 0.0
    %163 = vmatprep.subr.mxu0 0.0
    %164 = vmatpush1.msra.mxu0 0.0
    %165 = vmatprep.subr.mxu0 0.0
    %166 = vmatpush1.msra.mxu0 0.0
    %167 = vmatprep.subr.mxu0 0.0
    %168 = vmatpush1.msra.mxu0 0.0
    %169 = vmatprep.subr.mxu0 0.0
    %170 = vmatpush1.msra.mxu0 0.0
    %171 = vmatprep.subr.mxu0 0.0
    %172 = vmatpush1.msra.mxu0 0.0
    %173 = vmatprep.subr.mxu0 0.0
    %174 = vmatpush1.msra.mxu0 0.0
    %175 = vmatprep.subr.mxu0 0.0
    %176 = vmatpush1.msra.mxu0 0.0
    %177 = vmatprep.subr.mxu0 0.0
    %178 = vmatpush1.msra.mxu0 0.0
    %179 = vmatprep.subr.mxu0 0.0
    %180 = vmatpush1.msra.mxu0 0.0
    %181 = vmatprep.subr.mxu0 0.0
    %182 = vmatpush1.msra.mxu0 0.0
    %183 = vmatprep.subr.mxu0 0.0
    %184 = vmatpush1.msra.mxu0 0.0
    %185 = vmatprep.subr.mxu0 0.0
    %186 = vmatpush1.msra.mxu0 0.0
    %187 = vmatprep.subr.mxu0 0.0
    %188 = vmatpush1.msra.mxu0 0.0
    %189 = vmatprep.subr.mxu0 0.0
    %190 = vmatpush1.msra.mxu0 0.0
    %191 = vmatprep.subr.mxu0 0.0
    %192 = vmatpush1.msra.mxu0 0.0
    %193 = vmatprep.subr.mxu0 0.0
    %194 = vmatpush1.msra.mxu0 0.0
    %195 = vmatprep.subr.mxu0 0.0
    %196 = vmatpush1.msra.mxu0 0.0
    %197 = vmatprep.subr.mxu0 0.0
    %198 = vmatpush1.msra.mxu0 0.0
    %199 = vmatprep.subr.mxu0 0.0
    %200 = vmatpush1.msra.mxu0 0.0
    %201 = vmatprep.subr.mxu0 0.0
    %202 = vmatpush1.msra.mxu0 0.0
    %203 = vmatprep.subr.mxu0 0.0
    %204 = vmatpush1.msra.mxu0 0.0
    %205 = vmatprep.subr.mxu0 0.0
    %206 = vmatpush1.msra.mxu0 0.0
    %207 = vmatprep.mubr.f32.mxu0 0.0
    %208 = vmatmul.mubr.f32.gmra.mrb[0].mxu0 %v131
    %v209 = vpop.f32.mrb[0].mxu0
    %v210 = vadd.f32 %v122, %v209
    %v211 = vpop.f32.mrb[0].mxu0
    %v212 = vadd.f32 %v126, %v211
    %213 = vmatprep.mubr.f32.mxu0 0.0
    %214 = vmatmul.mubr.f32.gmra.mrb[0].mxu0 %v134
    %v215 = vpop.f32.mrb[0].mxu0
    %v216 = vadd.f32 %v122, %v215
    %v217 = vpop.f32.mrb[0].mxu0
    %v218 = vadd.f32 %v126, %v217
    %219 = vdwg.mxu0
    %v220 = vld [vmem:[%s1] sm:$0x3]
    %v221 = vmul.f32 %v220, 8.0
    %v222 = vcvt.f32.s32.to.zero.pseudo %v221
    %vm223 = vcmp.gt.s32.totalorder %v222, 0
    %v224 = vsel %vm223, %v222, 0
    %vm225 = vcmp.lt.s32.totalorder %v224, 7
    %v226 = vsel %vm225, %v224, 7
    %vm227 = vcmp.eq.s32.totalorder %v226, 0
    %vm228 = vcmp.eq.s32.totalorder %v226, 1
    %vm229 = vcmp.eq.s32.totalorder %v226, 2
    %vm230 = vcmp.eq.s32.totalorder %v226, 3
    %vm231 = vcmp.eq.s32.totalorder %v226, 4
    %vm232 = vcmp.eq.s32.totalorder %v226, 5
    %vm233 = vcmp.eq.s32.totalorder %v226, 6
    %vm234 = vcmp.eq.s32.totalorder %v226, 7
    %v235 = vsel %vm227, 1, 0
    %v236 = vsel %vm228, 1, 0
    %v237 = vsel %vm229, 1, 0
    %v238 = vsel %vm230, 1, 0
    %v239 = vsel %vm231, 1, 0
    %v240 = vsel %vm232, 1, 0
    %v241 = vsel %vm233, 1, 0
    %v242 = vsel %vm234, 1, 0
    %v243 = vcvt.s32.f32 %v235
    %v244 = vcvt.s32.f32 %v236
    %v245 = vcvt.s32.f32 %v237
    %v246 = vcvt.s32.f32 %v238
    %v247 = vcvt.s32.f32 %v239
    %v248 = vcvt.s32.f32 %v240
    %v249 = vcvt.s32.f32 %v241
    %v250 = vcvt.s32.f32 %v242
    %vm251 = vcmask 9216
    %v252 = vsel %vm251, %v243, 0.0
    %253 = vadd.xlane.f32.xlu0 %v252
    %v254 = vpop.xlane.xlu0 %253
    %v255 = vsel %vm251, %v244, 0.0
    %256 = vadd.xlane.f32.xlu0 %v255
    %v257 = vpop.xlane.xlu0 %256
    %v258 = vsel %vm251, %v245, 0.0
    %259 = vadd.xlane.f32.xlu0 %v258
    %v260 = vpop.xlane.xlu0 %259
    %v261 = vsel %vm251, %v246, 0.0
    %262 = vadd.xlane.f32.xlu0 %v261
    %v263 = vpop.xlane.xlu0 %262
    %v264 = vsel %vm251, %v247, 0.0
    %265 = vadd.xlane.f32.xlu0 %v264
    %v266 = vpop.xlane.xlu0 %265
    %v267 = vsel %vm251, %v248, 0.0
    %268 = vadd.xlane.f32.xlu0 %v267
    %v269 = vpop.xlane.xlu0 %268
    %v270 = vsel %vm251, %v249, 0.0
    %271 = vadd.xlane.f32.xlu0 %v270
    %v272 = vpop.xlane.xlu0 %271
    %v273 = vsel %vm251, %v250, 0.0
    %274 = vadd.xlane.f32.xlu0 %v273
    %v275 = vpop.xlane.xlu0 %274
    %v276 = vmul.f32 %v254, 0.5
    %v277 = vmul.f32 %v257, 0.5
    %v278 = vmul.f32 %v260, 0.5
    %v279 = vmul.f32 %v263, 0.5
    %v280 = vmul.f32 %v266, 0.5
    %v281 = vmul.f32 %v269, 0.5
    %v282 = vmul.f32 %v272, 0.5
    %v283 = vmul.f32 %v275, 0.5
    %v284 = vld [vmem:[%s5] sm:$0xff]
    %v285 = vld [vmem:[%s5 + $0x8] sm:$0xff]
    %v286 = vld [vmem:[%s5 + $0x10] sm:$0xff]
    %v287 = vld [vmem:[%s5 + $0x18] sm:$0xff]
    %v288 = vld [vmem:[%s5 + $0x20] sm:$0xff]
    %v289 = vld [vmem:[%s5 + $0x28] sm:$0xff]
    %v290 = vld [vmem:[%s5 + $0x30] sm:$0xff]
    %v291 = vld [vmem:[%s5 + $0x38] sm:$0xff]
    %v292 = vld [vmem:[%s5 + $0x40] sm:$0xff]
    %v293 = vld [vmem:[%s5 + $0x48] sm:$0xff]
    %v294 = vld [vmem:[%s5 + $0x50] sm:$0xff]
    %v295 = vld [vmem:[%s5 + $0x58] sm:$0xff]
    %v296 = vld [vmem:[%s5 + $0x60] sm:$0xff]
    %v297 = vld [vmem:[%s5 + $0x68] sm:$0xff]
    %v298 = vld [vmem:[%s5 + $0x70] sm:$0xff]
    %v299 = vld [vmem:[%s5 + $0x78] sm:$0xff]
    %vm300 = vcmask 523264
    %v302 = vsel %vm300, 0.0, 0
    %304 = vmatprep.subr.mxu0 %v285
    %305 = vmatpush1.msra.mxu0 %v284
    %306 = vmatprep.subr.mxu0 %v287
    %307 = vmatpush1.msra.mxu0 %v286
    %308 = vmatprep.subr.mxu0 %v289
    %309 = vmatpush1.msra.mxu0 %v288
    %310 = vmatprep.subr.mxu0 %v291
    %311 = vmatpush1.msra.mxu0 %v290
    %312 = vmatprep.subr.mxu0 %v293
    %313 = vmatpush1.msra.mxu0 %v292
    %314 = vmatprep.subr.mxu0 %v295
    %315 = vmatpush1.msra.mxu0 %v294
    %316 = vmatprep.subr.mxu0 %v297
    %317 = vmatpush1.msra.mxu0 %v296
    %318 = vmatprep.subr.mxu0 %v299
    %319 = vmatpush1.msra.mxu0 %v298
    %320 = vmatprep.subr.mxu0 0.0
    %321 = vmatpush1.msra.mxu0 0.0
    %322 = vmatprep.subr.mxu0 0.0
    %323 = vmatpush1.msra.mxu0 0.0
    %324 = vmatprep.subr.mxu0 0.0
    %325 = vmatpush1.msra.mxu0 0.0
    %326 = vmatprep.subr.mxu0 0.0
    %327 = vmatpush1.msra.mxu0 0.0
    %328 = vmatprep.subr.mxu0 0.0
    %329 = vmatpush1.msra.mxu0 0.0
    %330 = vmatprep.subr.mxu0 0.0
    %331 = vmatpush1.msra.mxu0 0.0
    %332 = vmatprep.subr.mxu0 0.0
    %333 = vmatpush1.msra.mxu0 0.0
    %334 = vmatprep.subr.mxu0 0.0
    %335 = vmatpush1.msra.mxu0 0.0
    %336 = vmatprep.subr.mxu0 0.0
    %337 = vmatpush1.msra.mxu0 0.0
    %338 = vmatprep.subr.mxu0 0.0
    %339 = vmatpush1.msra.mxu0 0.0
    %340 = vmatprep.subr.mxu0 0.0
    %341 = vmatpush1.msra.mxu0 0.0
    %342 = vmatprep.subr.mxu0 0.0
    %343 = vmatpush1.msra.mxu0 0.0
    %344 = vmatprep.subr.mxu0 0.0
    %345 = vmatpush1.msra.mxu0 0.0
    %346 = vmatprep.subr.mxu0 0.0
    %347 = vmatpush1.msra.mxu0 0.0
    %348 = vmatprep.subr.mxu0 0.0
    %349 = vmatpush1.msra.mxu0 0.0
    %350 = vmatprep.subr.mxu0 0.0
    %351 = vmatpush1.msra.mxu0 0.0
    %352 = vmatprep.subr.mxu0 0.0
    %353 = vmatpush1.msra.mxu0 0.0
    %354 = vmatprep.subr.mxu0 0.0
    %355 = vmatpush1.msra.mxu0 0.0
    %356 = vmatprep.subr.mxu0 0.0
    %357 = vmatpush1.msra.mxu0 0.0
    %358 = vmatprep.subr.mxu0 0.0
    %359 = vmatpush1.msra.mxu0 0.0
    %360 = vmatprep.subr.mxu0 0.0
    %361 = vmatpush1.msra.mxu0 0.0
    %362 = vmatprep.subr.mxu0 0.0
    %363 = vmatpush1.msra.mxu0 0.0
    %364 = vmatprep.subr.mxu0 0.0
    %365 = vmatpush1.msra.mxu0 0.0
    %366 = vmatprep.subr.mxu0 0.0
    %367 = vmatpush1.msra.mxu0 0.0
    %368 = vmatprep.mubr.f32.mxu0 0.0
    %369 = vmatmul.mubr.f32.gmra.mrb[0].mxu0 %v302
    %v370 = vpop.f32.mrb[0].mxu0
    %v371 = vadd.f32 0.0, %v370
    %v372 = vpop.f32.mrb[0].mxu0
    %v373 = vadd.f32 0.0, %v372
    %374 = vdwg.mxu0
    %v375 = vadd.f32 %v210, %v371
    %v376 = vadd.f32 %v212, %v373
    %v377 = vxor.u32 %v375, 2147483648
    %v378 = vxor.u32 %v376, 2147483648
    %v379 = vmul.f32 %v377, 1.442695
    %v380 = vpow.pop %v379
    %v381 = vmul.f32 %v378, 1.442695
    %v382 = vpow.pop %v381
    %v383 = vadd.f32 %v380, 1.0
    %v384 = vadd.f32 %v382, 1.0
    %v385 = vrcp.pop %v383
    %v386 = vmul.f32 1.0, %v385
    %v387 = vrcp.pop %v384
    %v388 = vmul.f32 1.0, %v387
    %v389 = vtanh.pop %v376
    %v390 = vmul.f32 %v386, 0.0
    %v391 = vmul.f32 %v386, %v389
    %393 = vrot.lane.b32.xlu0 %v391, 64
    %v394 = vpop.permute.xlu0 %393
    %v396 = vadd.f32 %v390, %v394
    %v397 = vtanh.pop %v396
    %v398 = vmul.f32 %v388, %v397
    %v399 = vmax.f32 %v398, 0.0
    %v400 = vadd.f32 %v399, 0.0
    %v401 = vmul.f32 %v276, %v399
    %v402 = vadd.f32 %v401, 0.0
    %404 = vrot.lane.b32.xlu0 %v398, 64
    %v405 = vpop.permute.xlu0 %404
    %v406 = vsel %vm300, %v405, 0
    %408 = vmatprep.subr.mxu0 %v285
    %409 = vmatpush1.msra.mxu0 %v284
    %410 = vmatprep.subr.mxu0 %v287
    %411 = vmatpush1.msra.mxu0 %v286
    %412 = vmatprep.subr.mxu0 %v289
    %413 = vmatpush1.msra.mxu0 %v288
    %414 = vmatprep.subr.mxu0 %v291
    %415 = vmatpush1.msra.mxu0 %v290
    %416 = vmatprep.subr.mxu0 %v293
    %417 = vmatpush1.msra.mxu0 %v292
    %418 = vmatprep.subr.mxu0 %v295
    %419 = vmatpush1.msra.mxu0 %v294
    %420 = vmatprep.subr.mxu0 %v297
    %421 = vmatpush1.msra.mxu0 %v296
    %422 = vmatprep.subr.mxu0 %v299
    %423 = vmatpush1.msra.mxu0 %v298
    %424 = vmatprep.subr.mxu0 0.0
    %425 = vmatpush1.msra.mxu0 0.0
    %426 = vmatprep.subr.mxu0 0.0
    %427 = vmatpush1.msra.mxu0 0.0
    %428 = vmatprep.subr.mxu0 0.0
    %429 = vmatpush1.msra.mxu0 0.0
    %430 = vmatprep.subr.mxu0 0.0
    %431 = vmatpush1.msra.mxu0 0.0
    %432 = vmatprep.subr.mxu0 0.0
    %433 = vmatpush1.msra.mxu0 0.0
    %434 = vmatprep.subr.mxu0 0.0
    %435 = vmatpush1.msra.mxu0 0.0
    %436 = vmatprep.subr.mxu0 0.0
    %437 = vmatpush1.msra.mxu0 0.0
    %438 = vmatprep.subr.mxu0 0.0
    %439 = vmatpush1.msra.mxu0 0.0
    %440 = vmatprep.subr.mxu0 0.0
    %441 = vmatpush1.msra.mxu0 0.0
    %442 = vmatprep.subr.mxu0 0.0
    %443 = vmatpush1.msra.mxu0 0.0
    %444 = vmatprep.subr.mxu0 0.0
    %445 = vmatpush1.msra.mxu0 0.0
    %446 = vmatprep.subr.mxu0 0.0
    %447 = vmatpush1.msra.mxu0 0.0
    %448 = vmatprep.subr.mxu0 0.0
    %449 = vmatpush1.msra.mxu0 0.0
    %450 = vmatprep.subr.mxu0 0.0
    %451 = vmatpush1.msra.mxu0 0.0
    %452 = vmatprep.subr.mxu0 0.0
    %453 = vmatpush1.msra.mxu0 0.0
    %454 = vmatprep.subr.mxu0 0.0
    %455 = vmatpush1.msra.mxu0 0.0
    %456 = vmatprep.subr.mxu0 0.0
    %457 = vmatpush1.msra.mxu0 0.0
    %458 = vmatprep.subr.mxu0 0.0
    %459 = vmatpush1.msra.mxu0 0.0
    %460 = vmatprep.subr.mxu0 0.0
    %461 = vmatpush1.msra.mxu0 0.0
    %462 = vmatprep.subr.mxu0 0.0
    %463 = vmatpush1.msra.mxu0 0.0
    %464 = vmatprep.subr.mxu0 0.0
    %465 = vmatpush1.msra.mxu0 0.0
    %466 = vmatprep.subr.mxu0 0.0
    %467 = vmatpush1.msra.mxu0 0.0
    %468 = vmatprep.subr.mxu0 0.0
    %469 = vmatpush1.msra.mxu0 0.0
    %470 = vmatprep.subr.mxu0 0.0
    %471 = vmatpush1.msra.mxu0 0.0
    %472 = vmatprep.mubr.f32.mxu0 0.0
    %473 = vmatmul.mubr.f32.gmra.mrb[0].mxu0 %v406
    %v474 = vpop.f32.mrb[0].mxu0
    %v475 = vadd.f32 0.0, %v474
    %v476 = vpop.f32.mrb[0].mxu0
    %v477 = vadd.f32 0.0, %v476
    %478 = vdwg.mxu0
    %v481 = vrot.slane %v475, 6
    %v482 = vrot.slane %v477, 6
    %v485 = vadd.f32 %v210, %v481
    %v486 = vadd.f32 %v212, %v482
    %v487 = vxor.u32 %v485, 2147483648
    %v488 = vxor.u32 %v486, 2147483648
    %v489 = vmul.f32 %v487, 1.442695
    %v490 = vpow.pop %v489
    %v491 = vmul.f32 %v488, 1.442695
    %v492 = vpow.pop %v491
    %v493 = vadd.f32 %v490, 1.0
    %v494 = vadd.f32 %v492, 1.0
    %v495 = vrcp.pop %v493
    %v496 = vmul.f32 1.0, %v495
    %v497 = vrcp.pop %v494
    %v498 = vmul.f32 1.0, %v497
    %v499 = vtanh.pop %v486
    %v501 = vrot.slane %v396, 6
    %v503 = vmul.f32 %v496, %v501
    %v504 = vmul.f32 %v496, %v499
    %506 = vrot.lane.b32.xlu0 %v504, 64
    %v507 = vpop.permute.xlu0 %506
    %v509 = vadd.f32 %v503, %v507
    %v510 = vtanh.pop %v509
    %v511 = vmul.f32 %v498, %v510
    %v512 = vmax.f32 %v511, 0.0
    %v514 = vrot.slane %v512, 2
    %v516 = vadd.f32 %v400, %v514
    %517 = vrot.lane.b32.xlu0 %v514, 64
    %v518 = vpop.permute.xlu0 %517
    %v520 = vmul.f32 %v277, %v518
    %522 = vrot.lane.b32.xlu0 %v520, 64
    %v523 = vpop.permute.xlu0 %522
    %v525 = vadd.f32 %v402, %v523
    %v527 = vrot.slane %v511, 2
    %528 = vrot.lane.b32.xlu0 %v527, 64
    %v529 = vpop.permute.xlu0 %528
    %v530 = vsel %vm300, %v529, 0
    %532 = vmatprep.subr.mxu0 %v285
    %533 = vmatpush1.msra.mxu0 %v284
    %534 = vmatprep.subr.mxu0 %v287
    %535 = vmatpush1.msra.mxu0 %v286
    %536 = vmatprep.subr.mxu0 %v289
    %537 = vmatpush1.msra.mxu0 %v288
    %538 = vmatprep.subr.mxu0 %v291
    %539 = vmatpush1.msra.mxu0 %v290
    %540 = vmatprep.subr.mxu0 %v293
    %541 = vmatpush1.msra.mxu0 %v292
    %542 = vmatprep.subr.mxu0 %v295
    %543 = vmatpush1.msra.mxu0 %v294
    %544 = vmatprep.subr.mxu0 %v297
    %545 = vmatpush1.msra.mxu0 %v296
    %546 = vmatprep.subr.mxu0 %v299
    %547 = vmatpush1.msra.mxu0 %v298
    %548 = vmatprep.subr.mxu0 0.0
    %549 = vmatpush1.msra.mxu0 0.0
    %550 = vmatprep.subr.mxu0 0.0
    %551 = vmatpush1.msra.mxu0 0.0
    %552 = vmatprep.subr.mxu0 0.0
    %553 = vmatpush1.msra.mxu0 0.0
    %554 = vmatprep.subr.mxu0 0.0
    %555 = vmatpush1.msra.mxu0 0.0
    %556 = vmatprep.subr.mxu0 0.0
    %557 = vmatpush1.msra.mxu0 0.0
    %558 = vmatprep.subr.mxu0 0.0
    %559 = vmatpush1.msra.mxu0 0.0
    %560 = vmatprep.subr.mxu0 0.0
    %561 = vmatpush1.msra.mxu0 0.0
    %562 = vmatprep.subr.mxu0 0.0
    %563 = vmatpush1.msra.mxu0 0.0
    %564 = vmatprep.subr.mxu0 0.0
    %565 = vmatpush1.msra.mxu0 0.0
    %566 = vmatprep.subr.mxu0 0.0
    %567 = vmatpush1.msra.mxu0 0.0
    %568 = vmatprep.subr.mxu0 0.0
    %569 = vmatpush1.msra.mxu0 0.0
    %570 = vmatprep.subr.mxu0 0.0
    %571 = vmatpush1.msra.mxu0 0.0
    %572 = vmatprep.subr.mxu0 0.0
    %573 = vmatpush1.msra.mxu0 0.0
    %574 = vmatprep.subr.mxu0 0.0
    %575 = vmatpush1.msra.mxu0 0.0
    %576 = vmatprep.subr.mxu0 0.0
    %577 = vmatpush1.msra.mxu0 0.0
    %578 = vmatprep.subr.mxu0 0.0
    %579 = vmatpush1.msra.mxu0 0.0
    %580 = vmatprep.subr.mxu0 0.0
    %581 = vmatpush1.msra.mxu0 0.0
    %582 = vmatprep.subr.mxu0 0.0
    %583 = vmatpush1.msra.mxu0 0.0
    %584 = vmatprep.subr.mxu0 0.0
    %585 = vmatpush1.msra.mxu0 0.0
    %586 = vmatprep.subr.mxu0 0.0
    %587 = vmatpush1.msra.mxu0 0.0
    %588 = vmatprep.subr.mxu0 0.0
    %589 = vmatpush1.msra.mxu0 0.0
    %590 = vmatprep.subr.mxu0 0.0
    %591 = vmatpush1.msra.mxu0 0.0
    %592 = vmatprep.subr.mxu0 0.0
    %593 = vmatpush1.msra.mxu0 0.0
    %594 = vmatprep.subr.mxu0 0.0
    %595 = vmatpush1.msra.mxu0 0.0
    %596 = vmatprep.mubr.f32.mxu0 0.0
    %597 = vmatmul.mubr.f32.gmra.mrb[0].mxu0 %v530
    %v598 = vpop.f32.mrb[0].mxu0
    %v599 = vadd.f32 0.0, %v598
    %v600 = vpop.f32.mrb[0].mxu0
    %v601 = vadd.f32 0.0, %v600
    %602 = vdwg.mxu0
    %v605 = vrot.slane %v599, 4
    %v606 = vrot.slane %v601, 4
    %v609 = vadd.f32 %v210, %v605
    %v610 = vadd.f32 %v212, %v606
    %v611 = vxor.u32 %v609, 2147483648
    %v612 = vxor.u32 %v610, 2147483648
    %v613 = vmul.f32 %v611, 1.442695
    %v614 = vpow.pop %v613
    %v615 = vmul.f32 %v612, 1.442695
    %v616 = vpow.pop %v615
    %v617 = vadd.f32 %v614, 1.0
    %v618 = vadd.f32 %v616, 1.0
    %v619 = vrcp.pop %v617
    %v620 = vmul.f32 1.0, %v619
    %v621 = vrcp.pop %v618
    %v622 = vmul.f32 1.0, %v621
    %v623 = vtanh.pop %v610
    %v625 = vrot.slane %v509, 6
    %v627 = vmul.f32 %v620, %v625
    %v628 = vmul.f32 %v620, %v623
    %630 = vrot.lane.b32.xlu0 %v628, 64
    %v631 = vpop.permute.xlu0 %630
    %v633 = vadd.f32 %v627, %v631
    %v634 = vtanh.pop %v633
    %v635 = vmul.f32 %v622, %v634
    %v636 = vmax.f32 %v635, 0.0
    %v638 = vrot.slane %v636, 4
    %v640 = vadd.f32 %v516, %v638
    %641 = vrot.lane.b32.xlu0 %v638, 64
    %v642 = vpop.permute.xlu0 %641
    %v644 = vmul.f32 %v278, %v642
    %646 = vrot.lane.b32.xlu0 %v644, 64
    %v647 = vpop.permute.xlu0 %646
    %v649 = vadd.f32 %v525, %v647
    %v651 = vrot.slane %v635, 4
    %652 = vrot.lane.b32.xlu0 %v651, 64
    %v653 = vpop.permute.xlu0 %652
    %v654 = vsel %vm300, %v653, 0
    %656 = vmatprep.subr.mxu0 %v285
    %657 = vmatpush1.msra.mxu0 %v284
    %658 = vmatprep.subr.mxu0 %v287
    %659 = vmatpush1.msra.mxu0 %v286
    %660 = vmatprep.subr.mxu0 %v289
    %661 = vmatpush1.msra.mxu0 %v288
    %662 = vmatprep.subr.mxu0 %v291
    %663 = vmatpush1.msra.mxu0 %v290
    %664 = vmatprep.subr.mxu0 %v293
    %665 = vmatpush1.msra.mxu0 %v292
    %666 = vmatprep.subr.mxu0 %v295
    %667 = vmatpush1.msra.mxu0 %v294
    %668 = vmatprep.subr.mxu0 %v297
    %669 = vmatpush1.msra.mxu0 %v296
    %670 = vmatprep.subr.mxu0 %v299
    %671 = vmatpush1.msra.mxu0 %v298
    %672 = vmatprep.subr.mxu0 0.0
    %673 = vmatpush1.msra.mxu0 0.0
    %674 = vmatprep.subr.mxu0 0.0
    %675 = vmatpush1.msra.mxu0 0.0
    %676 = vmatprep.subr.mxu0 0.0
    %677 = vmatpush1.msra.mxu0 0.0
    %678 = vmatprep.subr.mxu0 0.0
    %679 = vmatpush1.msra.mxu0 0.0
    %680 = vmatprep.subr.mxu0 0.0
    %681 = vmatpush1.msra.mxu0 0.0
    %682 = vmatprep.subr.mxu0 0.0
    %683 = vmatpush1.msra.mxu0 0.0
    %684 = vmatprep.subr.mxu0 0.0
    %685 = vmatpush1.msra.mxu0 0.0
    %686 = vmatprep.subr.mxu0 0.0
    %687 = vmatpush1.msra.mxu0 0.0
    %688 = vmatprep.subr.mxu0 0.0
    %689 = vmatpush1.msra.mxu0 0.0
    %690 = vmatprep.subr.mxu0 0.0
    %691 = vmatpush1.msra.mxu0 0.0
    %692 = vmatprep.subr.mxu0 0.0
    %693 = vmatpush1.msra.mxu0 0.0
    %694 = vmatprep.subr.mxu0 0.0
    %695 = vmatpush1.msra.mxu0 0.0
    %696 = vmatprep.subr.mxu0 0.0
    %697 = vmatpush1.msra.mxu0 0.0
    %698 = vmatprep.subr.mxu0 0.0
    %699 = vmatpush1.msra.mxu0 0.0
    %700 = vmatprep.subr.mxu0 0.0
    %701 = vmatpush1.msra.mxu0 0.0
    %702 = vmatprep.subr.mxu0 0.0
    %703 = vmatpush1.msra.mxu0 0.0
    %704 = vmatprep.subr.mxu0 0.0
    %705 = vmatpush1.msra.mxu0 0.0
    %706 = vmatprep.subr.mxu0 0.0
    %707 = vmatpush1.msra.mxu0 0.0
    %708 = vmatprep.subr.mxu0 0.0
    %709 = vmatpush1.msra.mxu0 0.0
    %710 = vmatprep.subr.mxu0 0.0
    %711 = vmatpush1.msra.mxu0 0.0
    %712 = vmatprep.subr.mxu0 0.0
    %713 = vmatpush1.msra.mxu0 0.0
    %714 = vmatprep.subr.mxu0 0.0
    %715 = vmatpush1.msra.mxu0 0.0
    %716 = vmatprep.subr.mxu0 0.0
    %717 = vmatpush1.msra.mxu0 0.0
    %718 = vmatprep.subr.mxu0 0.0
    %719 = vmatpush1.msra.mxu0 0.0
    %720 = vmatprep.mubr.f32.mxu0 0.0
    %721 = vmatmul.mubr.f32.gmra.mrb[0].mxu0 %v654
    %v722 = vpop.f32.mrb[0].mxu0
    %v723 = vadd.f32 0.0, %v722
    %v724 = vpop.f32.mrb[0].mxu0
    %v725 = vadd.f32 0.0, %v724
    %726 = vdwg.mxu0
    %v729 = vrot.slane %v723, 2
    %v730 = vrot.slane %v725, 2
    %v733 = vadd.f32 %v210, %v729
    %v734 = vadd.f32 %v212, %v730
    %v735 = vxor.u32 %v733, 2147483648
    %v736 = vxor.u32 %v734, 2147483648
    %v737 = vmul.f32 %v735, 1.442695
    %v738 = vpow.pop %v737
    %v739 = vmul.f32 %v736, 1.442695
    %v740 = vpow.pop %v739
    %v741 = vadd.f32 %v738, 1.0
    %v742 = vadd.f32 %v740, 1.0
    %v743 = vrcp.pop %v741
    %v744 = vmul.f32 1.0, %v743
    %v745 = vrcp.pop %v742
    %v746 = vmul.f32 1.0, %v745
    %v747 = vtanh.pop %v734
    %v749 = vrot.slane %v633, 6
    %v751 = vmul.f32 %v744, %v749
    %v752 = vmul.f32 %v744, %v747
    %754 = vrot.lane.b32.xlu0 %v752, 64
    %v755 = vpop.permute.xlu0 %754
    %v757 = vadd.f32 %v751, %v755
    %v758 = vtanh.pop %v757
    %v759 = vmul.f32 %v746, %v758
    %v760 = vmax.f32 %v759, 0.0
    %v762 = vrot.slane %v760, 6
    %v764 = vadd.f32 %v640, %v762
    %765 = vrot.lane.b32.xlu0 %v762, 64
    %v766 = vpop.permute.xlu0 %765
    %v768 = vmul.f32 %v279, %v766
    %770 = vrot.lane.b32.xlu0 %v768, 64
    %v771 = vpop.permute.xlu0 %770
    %v773 = vadd.f32 %v649, %v771
    %v775 = vrot.slane %v759, 6
    %776 = vrot.lane.b32.xlu0 %v775, 64
    %v777 = vpop.permute.xlu0 %776
    %v778 = vsel %vm300, %v777, 0
    %780 = vmatprep.subr.mxu0 %v285
    %781 = vmatpush1.msra.mxu0 %v284
    %782 = vmatprep.subr.mxu0 %v287
    %783 = vmatpush1.msra.mxu0 %v286
    %784 = vmatprep.subr.mxu0 %v289
    %785 = vmatpush1.msra.mxu0 %v288
    %786 = vmatprep.subr.mxu0 %v291
    %787 = vmatpush1.msra.mxu0 %v290
    %788 = vmatprep.subr.mxu0 %v293
    %789 = vmatpush1.msra.mxu0 %v292
    %790 = vmatprep.subr.mxu0 %v295
    %791 = vmatpush1.msra.mxu0 %v294
    %792 = vmatprep.subr.mxu0 %v297
    %793 = vmatpush1.msra.mxu0 %v296
    %794 = vmatprep.subr.mxu0 %v299
    %795 = vmatpush1.msra.mxu0 %v298
    %796 = vmatprep.subr.mxu0 0.0
    %797 = vmatpush1.msra.mxu0 0.0
    %798 = vmatprep.subr.mxu0 0.0
    %799 = vmatpush1.msra.mxu0 0.0
    %800 = vmatprep.subr.mxu0 0.0
    %801 = vmatpush1.msra.mxu0 0.0
    %802 = vmatprep.subr.mxu0 0.0
    %803 = vmatpush1.msra.mxu0 0.0
    %804 = vmatprep.subr.mxu0 0.0
    %805 = vmatpush1.msra.mxu0 0.0
    %806 = vmatprep.subr.mxu0 0.0
    %807 = vmatpush1.msra.mxu0 0.0
    %808 = vmatprep.subr.mxu0 0.0
    %809 = vmatpush1.msra.mxu0 0.0
    %810 = vmatprep.subr.mxu0 0.0
    %811 = vmatpush1.msra.mxu0 0.0
    %812 = vmatprep.subr.mxu0 0.0
    %813 = vmatpush1.msra.mxu0 0.0
    %814 = vmatprep.subr.mxu0 0.0
    %815 = vmatpush1.msra.mxu0 0.0
    %816 = vmatprep.subr.mxu0 0.0
    %817 = vmatpush1.msra.mxu0 0.0
    %818 = vmatprep.subr.mxu0 0.0
    %819 = vmatpush1.msra.mxu0 0.0
    %820 = vmatprep.subr.mxu0 0.0
    %821 = vmatpush1.msra.mxu0 0.0
    %822 = vmatprep.subr.mxu0 0.0
    %823 = vmatpush1.msra.mxu0 0.0
    %824 = vmatprep.subr.mxu0 0.0
    %825 = vmatpush1.msra.mxu0 0.0
    %826 = vmatprep.subr.mxu0 0.0
    %827 = vmatpush1.msra.mxu0 0.0
    %828 = vmatprep.subr.mxu0 0.0
    %829 = vmatpush1.msra.mxu0 0.0
    %830 = vmatprep.subr.mxu0 0.0
    %831 = vmatpush1.msra.mxu0 0.0
    %832 = vmatprep.subr.mxu0 0.0
    %833 = vmatpush1.msra.mxu0 0.0
    %834 = vmatprep.subr.mxu0 0.0
    %835 = vmatpush1.msra.mxu0 0.0
    %836 = vmatprep.subr.mxu0 0.0
    %837 = vmatpush1.msra.mxu0 0.0
    %838 = vmatprep.subr.mxu0 0.0
    %839 = vmatpush1.msra.mxu0 0.0
    %840 = vmatprep.subr.mxu0 0.0
    %841 = vmatpush1.msra.mxu0 0.0
    %842 = vmatprep.subr.mxu0 0.0
    %843 = vmatpush1.msra.mxu0 0.0
    %844 = vmatprep.mubr.f32.mxu0 0.0
    %845 = vmatmul.mubr.f32.gmra.mrb[0].mxu0 %v778
    %v846 = vpop.f32.mrb[0].mxu0
    %v847 = vadd.f32 0.0, %v846
    %v848 = vpop.f32.mrb[0].mxu0
    %v849 = vadd.f32 0.0, %v848
    %850 = vdwg.mxu0
    %v851 = vadd.f32 %v216, %v847
    %v852 = vadd.f32 %v218, %v849
    %v853 = vxor.u32 %v851, 2147483648
    %v854 = vxor.u32 %v852, 2147483648
    %v855 = vmul.f32 %v853, 1.442695
    %v856 = vpow.pop %v855
    %v857 = vmul.f32 %v854, 1.442695
    %v858 = vpow.pop %v857
    %v859 = vadd.f32 %v856, 1.0
    %v860 = vadd.f32 %v858, 1.0
    %v861 = vrcp.pop %v859
    %v862 = vmul.f32 1.0, %v861
    %v863 = vrcp.pop %v860
    %v864 = vmul.f32 1.0, %v863
    %v865 = vtanh.pop %v852
    %v867 = vrot.slane %v757, 6
    %v869 = vmul.f32 %v862, %v867
    %v870 = vmul.f32 %v862, %v865
    %872 = vrot.lane.b32.xlu0 %v870, 64
    %v873 = vpop.permute.xlu0 %872
    %v875 = vadd.f32 %v869, %v873
    %v876 = vtanh.pop %v875
    %v877 = vmul.f32 %v864, %v876
    %v878 = vmax.f32 %v877, 0.0
    %v879 = vadd.f32 %v764, %v878
    %v880 = vmul.f32 %v280, %v878
    %v881 = vadd.f32 %v773, %v880
    %883 = vrot.lane.b32.xlu0 %v877, 64
    %v884 = vpop.permute.xlu0 %883
    %v885 = vsel %vm300, %v884, 0
    %887 = vmatprep.subr.mxu0 %v285
    %888 = vmatpush1.msra.mxu0 %v284
    %889 = vmatprep.subr.mxu0 %v287
    %890 = vmatpush1.msra.mxu0 %v286
    %891 = vmatprep.subr.mxu0 %v289
    %892 = vmatpush1.msra.mxu0 %v288
    %893 = vmatprep.subr.mxu0 %v291
    %894 = vmatpush1.msra.mxu0 %v290
    %895 = vmatprep.subr.mxu0 %v293
    %896 = vmatpush1.msra.mxu0 %v292
    %897 = vmatprep.subr.mxu0 %v295
    %898 = vmatpush1.msra.mxu0 %v294
    %899 = vmatprep.subr.mxu0 %v297
    %900 = vmatpush1.msra.mxu0 %v296
    %901 = vmatprep.subr.mxu0 %v299
    %902 = vmatpush1.msra.mxu0 %v298
    %903 = vmatprep.subr.mxu0 0.0
    %904 = vmatpush1.msra.mxu0 0.0
    %905 = vmatprep.subr.mxu0 0.0
    %906 = vmatpush1.msra.mxu0 0.0
    %907 = vmatprep.subr.mxu0 0.0
    %908 = vmatpush1.msra.mxu0 0.0
    %909 = vmatprep.subr.mxu0 0.0
    %910 = vmatpush1.msra.mxu0 0.0
    %911 = vmatprep.subr.mxu0 0.0
    %912 = vmatpush1.msra.mxu0 0.0
    %913 = vmatprep.subr.mxu0 0.0
    %914 = vmatpush1.msra.mxu0 0.0
    %915 = vmatprep.subr.mxu0 0.0
    %916 = vmatpush1.msra.mxu0 0.0
    %917 = vmatprep.subr.mxu0 0.0
    %918 = vmatpush1.msra.mxu0 0.0
    %919 = vmatprep.subr.mxu0 0.0
    %920 = vmatpush1.msra.mxu0 0.0
    %921 = vmatprep.subr.mxu0 0.0
    %922 = vmatpush1.msra.mxu0 0.0
    %923 = vmatprep.subr.mxu0 0.0
    %924 = vmatpush1.msra.mxu0 0.0
    %925 = vmatprep.subr.mxu0 0.0
    %926 = vmatpush1.msra.mxu0 0.0
    %927 = vmatprep.subr.mxu0 0.0
    %928 = vmatpush1.msra.mxu0 0.0
    %929 = vmatprep.subr.mxu0 0.0
    %930 = vmatpush1.msra.mxu0 0.0
    %931 = vmatprep.subr.mxu0 0.0
    %932 = vmatpush1.msra.mxu0 0.0
    %933 = vmatprep.subr.mxu0 0.0
    %934 = vmatpush1.msra.mxu0 0.0
    %935 = vmatprep.subr.mxu0 0.0
    %936 = vmatpush1.msra.mxu0 0.0
    %937 = vmatprep.subr.mxu0 0.0
    %938 = vmatpush1.msra.mxu0 0.0
    %939 = vmatprep.subr.mxu0 0.0
    %940 = vmatpush1.msra.mxu0 0.0
    %941 = vmatprep.subr.mxu0 0.0
    %942 = vmatpush1.msra.mxu0 0.0
    %943 = vmatprep.subr.mxu0 0.0
    %944 = vmatpush1.msra.mxu0 0.0
    %945 = vmatprep.subr.mxu0 0.0
    %946 = vmatpush1.msra.mxu0 0.0
    %947 = vmatprep.subr.mxu0 0.0
    %948 = vmatpush1.msra.mxu0 0.0
    %949 = vmatprep.subr.mxu0 0.0
    %950 = vmatpush1.msra.mxu0 0.0
    %951 = vmatprep.mubr.f32.mxu0 0.0
    %952 = vmatmul.mubr.f32.gmra.mrb[0].mxu0 %v885
    %v953 = vpop.f32.mrb[0].mxu0
    %v954 = vadd.f32 0.0, %v953
    %v955 = vpop.f32.mrb[0].mxu0
    %v956 = vadd.f32 0.0, %v955
    %957 = vdwg.mxu0
    %v960 = vrot.slane %v954, 6
    %v961 = vrot.slane %v956, 6
    %v964 = vadd.f32 %v216, %v960
    %v965 = vadd.f32 %v218, %v961
    %v966 = vxor.u32 %v964, 2147483648
    %v967 = vxor.u32 %v965, 2147483648
    %v968 = vmul.f32 %v966, 1.442695
    %v969 = vpow.pop %v968
    %v970 = vmul.f32 %v967, 1.442695
    %v971 = vpow.pop %v970
    %v972 = vadd.f32 %v969, 1.0
    %v973 = vadd.f32 %v971, 1.0
    %v974 = vrcp.pop %v972
    %v975 = vmul.f32 1.0, %v974
    %v976 = vrcp.pop %v973
    %v977 = vmul.f32 1.0, %v976
    %v978 = vtanh.pop %v965
    %v980 = vrot.slane %v875, 6
    %v982 = vmul.f32 %v975, %v980
    %v983 = vmul.f32 %v975, %v978
    %985 = vrot.lane.b32.xlu0 %v983, 64
    %v986 = vpop.permute.xlu0 %985
    %v988 = vadd.f32 %v982, %v986
    %v989 = vtanh.pop %v988
    %v990 = vmul.f32 %v977, %v989
    %v991 = vmax.f32 %v990, 0.0
    %v993 = vrot.slane %v991, 2
    %v995 = vadd.f32 %v879, %v993
    %996 = vrot.lane.b32.xlu0 %v993, 64
    %v997 = vpop.permute.xlu0 %996
    %v999 = vmul.f32 %v281, %v997
    %1001 = vrot.lane.b32.xlu0 %v999, 64
    %v1002 = vpop.permute.xlu0 %1001
    %v1004 = vadd.f32 %v881, %v1002
    %v1006 = vrot.slane %v990, 2
    %1007 = vrot.lane.b32.xlu0 %v1006, 64
    %v1008 = vpop.permute.xlu0 %1007
    %v1009 = vsel %vm300, %v1008, 0
    %1011 = vmatprep.subr.mxu0 %v285
    %1012 = vmatpush1.msra.mxu0 %v284
    %1013 = vmatprep.subr.mxu0 %v287
    %1014 = vmatpush1.msra.mxu0 %v286
    %1015 = vmatprep.subr.mxu0 %v289
    %1016 = vmatpush1.msra.mxu0 %v288
    %1017 = vmatprep.subr.mxu0 %v291
    %1018 = vmatpush1.msra.mxu0 %v290
    %1019 = vmatprep.subr.mxu0 %v293
    %1020 = vmatpush1.msra.mxu0 %v292
    %1021 = vmatprep.subr.mxu0 %v295
    %1022 = vmatpush1.msra.mxu0 %v294
    %1023 = vmatprep.subr.mxu0 %v297
    %1024 = vmatpush1.msra.mxu0 %v296
    %1025 = vmatprep.subr.mxu0 %v299
    %1026 = vmatpush1.msra.mxu0 %v298
    %1027 = vmatprep.subr.mxu0 0.0
    %1028 = vmatpush1.msra.mxu0 0.0
    %1029 = vmatprep.subr.mxu0 0.0
    %1030 = vmatpush1.msra.mxu0 0.0
    %1031 = vmatprep.subr.mxu0 0.0
    %1032 = vmatpush1.msra.mxu0 0.0
    %1033 = vmatprep.subr.mxu0 0.0
    %1034 = vmatpush1.msra.mxu0 0.0
    %1035 = vmatprep.subr.mxu0 0.0
    %1036 = vmatpush1.msra.mxu0 0.0
    %1037 = vmatprep.subr.mxu0 0.0
    %1038 = vmatpush1.msra.mxu0 0.0
    %1039 = vmatprep.subr.mxu0 0.0
    %1040 = vmatpush1.msra.mxu0 0.0
    %1041 = vmatprep.subr.mxu0 0.0
    %1042 = vmatpush1.msra.mxu0 0.0
    %1043 = vmatprep.subr.mxu0 0.0
    %1044 = vmatpush1.msra.mxu0 0.0
    %1045 = vmatprep.subr.mxu0 0.0
    %1046 = vmatpush1.msra.mxu0 0.0
    %1047 = vmatprep.subr.mxu0 0.0
    %1048 = vmatpush1.msra.mxu0 0.0
    %1049 = vmatprep.subr.mxu0 0.0
    %1050 = vmatpush1.msra.mxu0 0.0
    %1051 = vmatprep.subr.mxu0 0.0
    %1052 = vmatpush1.msra.mxu0 0.0
    %1053 = vmatprep.subr.mxu0 0.0
    %1054 = vmatpush1.msra.mxu0 0.0
    %1055 = vmatprep.subr.mxu0 0.0
    %1056 = vmatpush1.msra.mxu0 0.0
    %1057 = vmatprep.subr.mxu0 0.0
    %1058 = vmatpush1.msra.mxu0 0.0
    %1059 = vmatprep.subr.mxu0 0.0
    %1060 = vmatpush1.msra.mxu0 0.0
    %1061 = vmatprep.subr.mxu0 0.0
    %1062 = vmatpush1.msra.mxu0 0.0
    %1063 = vmatprep.subr.mxu0 0.0
    %1064 = vmatpush1.msra.mxu0 0.0
    %1065 = vmatprep.subr.mxu0 0.0
    %1066 = vmatpush1.msra.mxu0 0.0
    %1067 = vmatprep.subr.mxu0 0.0
    %1068 = vmatpush1.msra.mxu0 0.0
    %1069 = vmatprep.subr.mxu0 0.0
    %1070 = vmatpush1.msra.mxu0 0.0
    %1071 = vmatprep.subr.mxu0 0.0
    %1072 = vmatpush1.msra.mxu0 0.0
    %1073 = vmatprep.subr.mxu0 0.0
    %1074 = vmatpush1.msra.mxu0 0.0
    %1075 = vmatprep.mubr.f32.mxu0 0.0
    %1076 = vmatmul.mubr.f32.gmra.mrb[0].mxu0 %v1009
    %v1077 = vpop.f32.mrb[0].mxu0
    %v1078 = vadd.f32 0.0, %v1077
    %v1079 = vpop.f32.mrb[0].mxu0
    %v1080 = vadd.f32 0.0, %v1079
    %1081 = vdwg.mxu0
    %v1084 = vrot.slane %v1078, 4
    %v1085 = vrot.slane %v1080, 4
    %v1088 = vadd.f32 %v216, %v1084
    %v1089 = vadd.f32 %v218, %v1085
    %v1090 = vxor.u32 %v1088, 2147483648
    %v1091 = vxor.u32 %v1089, 2147483648
    %v1092 = vmul.f32 %v1090, 1.442695
    %v1093 = vpow.pop %v1092
    %v1094 = vmul.f32 %v1091, 1.442695
    %v1095 = vpow.pop %v1094
    %v1096 = vadd.f32 %v1093, 1.0
    %v1097 = vadd.f32 %v1095, 1.0
    %v1098 = vrcp.pop %v1096
    %v1099 = vmul.f32 1.0, %v1098
    %v1100 = vrcp.pop %v1097
    %v1101 = vmul.f32 1.0, %v1100
    %v1102 = vtanh.pop %v1089
    %v1104 = vrot.slane %v988, 6
    %v1106 = vmul.f32 %v1099, %v1104
    %v1107 = vmul.f32 %v1099, %v1102
    %1109 = vrot.lane.b32.xlu0 %v1107, 64
    %v1110 = vpop.permute.xlu0 %1109
    %v1112 = vadd.f32 %v1106, %v1110
    %v1113 = vtanh.pop %v1112
    %v1114 = vmul.f32 %v1101, %v1113
    %v1115 = vmax.f32 %v1114, 0.0
    %v1117 = vrot.slane %v1115, 4
    %v1119 = vadd.f32 %v995, %v1117
    %1120 = vrot.lane.b32.xlu0 %v1117, 64
    %v1121 = vpop.permute.xlu0 %1120
    %v1123 = vmul.f32 %v282, %v1121
    %1125 = vrot.lane.b32.xlu0 %v1123, 64
    %v1126 = vpop.permute.xlu0 %1125
    %v1128 = vadd.f32 %v1004, %v1126
    %v1130 = vrot.slane %v1114, 4
    %1131 = vrot.lane.b32.xlu0 %v1130, 64
    %v1132 = vpop.permute.xlu0 %1131
    %v1133 = vsel %vm300, %v1132, 0
    %1135 = vmatprep.subr.mxu0 %v285
    %1136 = vmatpush1.msra.mxu0 %v284
    %1137 = vmatprep.subr.mxu0 %v287
    %1138 = vmatpush1.msra.mxu0 %v286
    %1139 = vmatprep.subr.mxu0 %v289
    %1140 = vmatpush1.msra.mxu0 %v288
    %1141 = vmatprep.subr.mxu0 %v291
    %1142 = vmatpush1.msra.mxu0 %v290
    %1143 = vmatprep.subr.mxu0 %v293
    %1144 = vmatpush1.msra.mxu0 %v292
    %1145 = vmatprep.subr.mxu0 %v295
    %1146 = vmatpush1.msra.mxu0 %v294
    %1147 = vmatprep.subr.mxu0 %v297
    %1148 = vmatpush1.msra.mxu0 %v296
    %1149 = vmatprep.subr.mxu0 %v299
    %1150 = vmatpush1.msra.mxu0 %v298
    %1151 = vmatprep.subr.mxu0 0.0
    %1152 = vmatpush1.msra.mxu0 0.0
    %1153 = vmatprep.subr.mxu0 0.0
    %1154 = vmatpush1.msra.mxu0 0.0
    %1155 = vmatprep.subr.mxu0 0.0
    %1156 = vmatpush1.msra.mxu0 0.0
    %1157 = vmatprep.subr.mxu0 0.0
    %1158 = vmatpush1.msra.mxu0 0.0
    %1159 = vmatprep.subr.mxu0 0.0
    %1160 = vmatpush1.msra.mxu0 0.0
    %1161 = vmatprep.subr.mxu0 0.0
    %1162 = vmatpush1.msra.mxu0 0.0
    %1163 = vmatprep.subr.mxu0 0.0
    %1164 = vmatpush1.msra.mxu0 0.0
    %1165 = vmatprep.subr.mxu0 0.0
    %1166 = vmatpush1.msra.mxu0 0.0
    %1167 = vmatprep.subr.mxu0 0.0
    %1168 = vmatpush1.msra.mxu0 0.0
    %1169 = vmatprep.subr.mxu0 0.0
    %1170 = vmatpush1.msra.mxu0 0.0
    %1171 = vmatprep.subr.mxu0 0.0
    %1172 = vmatpush1.msra.mxu0 0.0
    %1173 = vmatprep.subr.mxu0 0.0
    %1174 = vmatpush1.msra.mxu0 0.0
    %1175 = vmatprep.subr.mxu0 0.0
    %1176 = vmatpush1.msra.mxu0 0.0
    %1177 = vmatprep.subr.mxu0 0.0
    %1178 = vmatpush1.msra.mxu0 0.0
    %1179 = vmatprep.subr.mxu0 0.0
    %1180 = vmatpush1.msra.mxu0 0.0
    %1181 = vmatprep.subr.mxu0 0.0
    %1182 = vmatpush1.msra.mxu0 0.0
    %1183 = vmatprep.subr.mxu0 0.0
    %1184 = vmatpush1.msra.mxu0 0.0
    %1185 = vmatprep.subr.mxu0 0.0
    %1186 = vmatpush1.msra.mxu0 0.0
    %1187 = vmatprep.subr.mxu0 0.0
    %1188 = vmatpush1.msra.mxu0 0.0
    %1189 = vmatprep.subr.mxu0 0.0
    %1190 = vmatpush1.msra.mxu0 0.0
    %1191 = vmatprep.subr.mxu0 0.0
    %1192 = vmatpush1.msra.mxu0 0.0
    %1193 = vmatprep.subr.mxu0 0.0
    %1194 = vmatpush1.msra.mxu0 0.0
    %1195 = vmatprep.subr.mxu0 0.0
    %1196 = vmatpush1.msra.mxu0 0.0
    %1197 = vmatprep.subr.mxu0 0.0
    %1198 = vmatpush1.msra.mxu0 0.0
    %1199 = vmatprep.mubr.f32.mxu0 0.0
    %1200 = vmatmul.mubr.f32.gmra.mrb[0].mxu0 %v1133
    %v1201 = vpop.f32.mrb[0].mxu0
    %v1202 = vadd.f32 0.0, %v1201
    %v1203 = vpop.f32.mrb[0].mxu0
    %v1204 = vadd.f32 0.0, %v1203
    %1205 = vdwg.mxu0
    %v1208 = vrot.slane %v1202, 2
    %v1209 = vrot.slane %v1204, 2
    %v1212 = vadd.f32 %v216, %v1208
    %v1213 = vadd.f32 %v218, %v1209
    %v1214 = vxor.u32 %v1212, 2147483648
    %v1215 = vxor.u32 %v1213, 2147483648
    %v1216 = vmul.f32 %v1214, 1.442695
    %v1217 = vpow.pop %v1216
    %v1218 = vmul.f32 %v1215, 1.442695
    %v1219 = vpow.pop %v1218
    %v1220 = vadd.f32 %v1217, 1.0
    %v1221 = vadd.f32 %v1219, 1.0
    %v1222 = vrcp.pop %v1220
    %v1223 = vmul.f32 1.0, %v1222
    %v1224 = vrcp.pop %v1221
    %v1225 = vmul.f32 1.0, %v1224
    %v1226 = vtanh.pop %v1213
    %v1228 = vrot.slane %v1112, 6
    %v1230 = vmul.f32 %v1223, %v1228
    %v1231 = vmul.f32 %v1223, %v1226
    %1233 = vrot.lane.b32.xlu0 %v1231, 64
    %v1234 = vpop.permute.xlu0 %1233
    %v1236 = vadd.f32 %v1230, %v1234
    %v1237 = vtanh.pop %v1236
    %v1238 = vmul.f32 %v1225, %v1237
    %v1239 = vmax.f32 %v1238, 0.0
    %v1241 = vrot.slane %v1239, 6
    %v1243 = vadd.f32 %v1119, %v1241
    %1244 = vrot.lane.b32.xlu0 %v1241, 64
    %v1245 = vpop.permute.xlu0 %1244
    %v1247 = vmul.f32 %v283, %v1245
    %1249 = vrot.lane.b32.xlu0 %v1247, 64
    %v1250 = vpop.permute.xlu0 %1249
    %v1252 = vadd.f32 %v1128, %v1250
    %v1253 = vld [vmem:[#allocation8] sm:$0xff]
    %v1254 = vld [vmem:[#allocation8 + $0x8] sm:$0xff]
    %v1255 = vld [vmem:[#allocation8 + $0x10] sm:$0xff]
    %v1256 = vld [vmem:[#allocation8 + $0x18] sm:$0xff]
    %v1257 = vld [vmem:[#allocation8 + $0x20] sm:$0xff]
    %v1258 = vld [vmem:[#allocation8 + $0x28] sm:$0xff]
    %v1259 = vld [vmem:[#allocation8 + $0x30] sm:$0xff]
    %v1260 = vld [vmem:[#allocation8 + $0x38] sm:$0xff]
    %v1261 = vld [vmem:[%s8] sm:$0x1]
    %v1262 = vmul.f32 %v1243, 0.125
    %v1264 = vlaneseq
    %v1265 = vshrl.u32 %v1264, 7
    %v1266 = vsub.s32 0, %v1265
    %v1267 = vrot.slane %v1261, %v1266
    %1270 = vrot.lane.b32.xlu0 %v1262, 64
    %v1271 = vpop.permute.xlu0 %1270
    %v1272 = vsel %vm300, %v1271, 0
    %1274 = vmatprep.subr.mxu0 0.0
    %1275 = vmatpush1.msra.mxu0 %v1253
    %1276 = vmatprep.subr.mxu0 0.0
    %1277 = vmatpush1.msra.mxu0 %v1254
    %1278 = vmatprep.subr.mxu0 0.0
    %1279 = vmatpush1.msra.mxu0 %v1255
    %1280 = vmatprep.subr.mxu0 0.0
    %1281 = vmatpush1.msra.mxu0 %v1256
    %1282 = vmatprep.subr.mxu0 0.0
    %1283 = vmatpush1.msra.mxu0 %v1257
    %1284 = vmatprep.subr.mxu0 0.0
    %1285 = vmatpush1.msra.mxu0 %v1258
    %1286 = vmatprep.subr.mxu0 0.0
    %1287 = vmatpush1.msra.mxu0 %v1259
    %1288 = vmatprep.subr.mxu0 0.0
    %1289 = vmatpush1.msra.mxu0 %v1260
    %1290 = vmatprep.subr.mxu0 0.0
    %1291 = vmatpush1.msra.mxu0 0.0
    %1292 = vmatprep.subr.mxu0 0.0
    %1293 = vmatpush1.msra.mxu0 0.0
    %1294 = vmatprep.subr.mxu0 0.0
    %1295 = vmatpush1.msra.mxu0 0.0
    %1296 = vmatprep.subr.mxu0 0.0
    %1297 = vmatpush1.msra.mxu0 0.0
    %1298 = vmatprep.subr.mxu0 0.0
    %1299 = vmatpush1.msra.mxu0 0.0
    %1300 = vmatprep.subr.mxu0 0.0
    %1301 = vmatpush1.msra.mxu0 0.0
    %1302 = vmatprep.subr.mxu0 0.0
    %1303 = vmatpush1.msra.mxu0 0.0
    %1304 = vmatprep.subr.mxu0 0.0
    %1305 = vmatpush1.msra.mxu0 0.0
    %1306 = vmatprep.subr.mxu0 0.0
    %1307 = vmatpush1.msra.mxu0 0.0
    %1308 = vmatprep.subr.mxu0 0.0
    %1309 = vmatpush1.msra.mxu0 0.0
    %1310 = vmatprep.subr.mxu0 0.0
    %1311 = vmatpush1.msra.mxu0 0.0
    %1312 = vmatprep.subr.mxu0 0.0
    %1313 = vmatpush1.msra.mxu0 0.0
    %1314 = vmatprep.subr.mxu0 0.0
    %1315 = vmatpush1.msra.mxu0 0.0
    %1316 = vmatprep.subr.mxu0 0.0
    %1317 = vmatpush1.msra.mxu0 0.0
    %1318 = vmatprep.subr.mxu0 0.0
    %1319 = vmatpush1.msra.mxu0 0.0
    %1320 = vmatprep.subr.mxu0 0.0
    %1321 = vmatpush1.msra.mxu0 0.0
    %1322 = vmatprep.subr.mxu0 0.0
    %1323 = vmatpush1.msra.mxu0 0.0
    %1324 = vmatprep.subr.mxu0 0.0
    %1325 = vmatpush1.msra.mxu0 0.0
    %1326 = vmatprep.subr.mxu0 0.0
    %1327 = vmatpush1.msra.mxu0 0.0
    %1328 = vmatprep.subr.mxu0 0.0
    %1329 = vmatpush1.msra.mxu0 0.0
    %1330 = vmatprep.subr.mxu0 0.0
    %1331 = vmatpush1.msra.mxu0 0.0
    %1332 = vmatprep.subr.mxu0 0.0
    %1333 = vmatpush1.msra.mxu0 0.0
    %1334 = vmatprep.subr.mxu0 0.0
    %1335 = vmatpush1.msra.mxu0 0.0
    %1336 = vmatprep.subr.mxu0 0.0
    %1337 = vmatpush1.msra.mxu0 0.0
    %1338 = vmatprep.mubr.f32.mxu0 0.0
    %1339 = vmatmul.mubr.f32.gmra.mrb[0].mxu0 %v1272
    %v1340 = vpop.f32.mrb[0].mxu0
    %v1341 = vadd.f32 %v1267, %v1340
    %v1342 = vpop.f32.mrb[0].mxu0
    %1343 = vdwg.mxu0
    %1345 = vrot.lane.b32.xlu0 %v1252, 64
    %v1346 = vpop.permute.xlu0 %1345
    %v1347 = vsel %vm300, %v1346, 0
    %1349 = vmatprep.subr.mxu0 0.0
    %1350 = vmatpush1.msra.mxu0 %v1253
    %1351 = vmatprep.subr.mxu0 0.0
    %1352 = vmatpush1.msra.mxu0 %v1254
    %1353 = vmatprep.subr.mxu0 0.0
    %1354 = vmatpush1.msra.mxu0 %v1255
    %1355 = vmatprep.subr.mxu0 0.0
    %1356 = vmatpush1.msra.mxu0 %v1256
    %1357 = vmatprep.subr.mxu0 0.0
    %1358 = vmatpush1.msra.mxu0 %v1257
    %1359 = vmatprep.subr.mxu0 0.0
    %1360 = vmatpush1.msra.mxu0 %v1258
    %1361 = vmatprep.subr.mxu0 0.0
    %1362 = vmatpush1.msra.mxu0 %v1259
    %1363 = vmatprep.subr.mxu0 0.0
    %1364 = vmatpush1.msra.mxu0 %v1260
    %1365 = vmatprep.subr.mxu0 0.0
    %1366 = vmatpush1.msra.mxu0 0.0
    %1367 = vmatprep.subr.mxu0 0.0
    %1368 = vmatpush1.msra.mxu0 0.0
    %1369 = vmatprep.subr.mxu0 0.0
    %1370 = vmatpush1.msra.mxu0 0.0
    %1371 = vmatprep.subr.mxu0 0.0
    %1372 = vmatpush1.msra.mxu0 0.0
    %1373 = vmatprep.subr.mxu0 0.0
    %1374 = vmatpush1.msra.mxu0 0.0
    %1375 = vmatprep.subr.mxu0 0.0
    %1376 = vmatpush1.msra.mxu0 0.0
    %1377 = vmatprep.subr.mxu0 0.0
    %1378 = vmatpush1.msra.mxu0 0.0
    %1379 = vmatprep.subr.mxu0 0.0
    %1380 = vmatpush1.msra.mxu0 0.0
    %1381 = vmatprep.subr.mxu0 0.0
    %1382 = vmatpush1.msra.mxu0 0.0
    %1383 = vmatprep.subr.mxu0 0.0
    %1384 = vmatpush1.msra.mxu0 0.0
    %1385 = vmatprep.subr.mxu0 0.0
    %1386 = vmatpush1.msra.mxu0 0.0
    %1387 = vmatprep.subr.mxu0 0.0
    %1388 = vmatpush1.msra.mxu0 0.0
    %1389 = vmatprep.subr.mxu0 0.0
    %1390 = vmatpush1.msra.mxu0 0.0
    %1391 = vmatprep.subr.mxu0 0.0
    %1392 = vmatpush1.msra.mxu0 0.0
    %1393 = vmatprep.subr.mxu0 0.0
    %1394 = vmatpush1.msra.mxu0 0.0
    %1395 = vmatprep.subr.mxu0 0.0
    %1396 = vmatpush1.msra.mxu0 0.0
    %1397 = vmatprep.subr.mxu0 0.0
    %1398 = vmatpush1.msra.mxu0 0.0
    %1399 = vmatprep.subr.mxu0 0.0
    %1400 = vmatpush1.msra.mxu0 0.0
    %1401 = vmatprep.subr.mxu0 0.0
    %1402 = vmatpush1.msra.mxu0 0.0
    %1403 = vmatprep.subr.mxu0 0.0
    %1404 = vmatpush1.msra.mxu0 0.0
    %1405 = vmatprep.subr.mxu0 0.0
    %1406 = vmatpush1.msra.mxu0 0.0
    %1407 = vmatprep.subr.mxu0 0.0
    %1408 = vmatpush1.msra.mxu0 0.0
    %1409 = vmatprep.subr.mxu0 0.0
    %1410 = vmatpush1.msra.mxu0 0.0
    %1411 = vmatprep.subr.mxu0 0.0
    %1412 = vmatpush1.msra.mxu0 0.0
    %1413 = vmatprep.mubr.f32.mxu0 0.0
    %1414 = vmatmul.mubr.f32.gmra.mrb[0].mxu0 %v1347
    %v1415 = vpop.f32.mrb[0].mxu0
    %v1416 = vadd.f32 %v1267, %v1415
    %v1417 = vpop.f32.mrb[0].mxu0
    %1418 = vdwg.mxu0
    %1420 = vrot.lane.b32.xlu0 %v1416, 64
    %v1421 = vpop.permute.xlu0 %1420
    %v1423 = vsel %vm300, %v1341, %v1421
    %v1424 = vld [vmem:[%s3] sm:$0x3]
    %v1425 = vld [vmem:[%s9] sm:$0xff]
    %v1426 = vld [vmem:[%s9 + $0x8] sm:$0xff]
    %v1427 = vld [vmem:[%s9 + $0x10] sm:$0xff]
    %v1428 = vld [vmem:[%s9 + $0x18] sm:$0xff]
    %v1429 = vld [vmem:[%s9 + $0x20] sm:$0xff]
    %v1430 = vld [vmem:[%s9 + $0x28] sm:$0xff]
    %v1431 = vld [vmem:[%s9 + $0x30] sm:$0xff]
    %v1432 = vld [vmem:[%s9 + $0x38] sm:$0xff]
    %v1433 = vld [vmem:[%s9 + $0x40] sm:$0xff]
    %v1434 = vld [vmem:[%s9 + $0x48] sm:$0xff]
    %v1435 = vld [vmem:[%s9 + $0x50] sm:$0xff]
    %v1436 = vld [vmem:[%s9 + $0x58] sm:$0xff]
    %v1437 = vld [vmem:[%s9 + $0x60] sm:$0xff]
    %v1438 = vld [vmem:[%s9 + $0x68] sm:$0xff]
    %v1439 = vld [vmem:[%s9 + $0x70] sm:$0xff]
    %v1440 = vld [vmem:[%s9 + $0x78] sm:$0xff]
    %v1441 = vld [vmem:[%s10] sm:$0xff]
    %v1442 = vld [vmem:[%s10 + $0x8] sm:$0xff]
    %v1443 = vld [vmem:[%s10 + $0x10] sm:$0xff]
    %v1444 = vld [vmem:[%s10 + $0x18] sm:$0xff]
    %v1445 = vld [vmem:[%s10 + $0x20] sm:$0xff]
    %v1446 = vld [vmem:[%s10 + $0x28] sm:$0xff]
    %v1447 = vld [vmem:[%s10 + $0x30] sm:$0xff]
    %v1448 = vld [vmem:[%s10 + $0x38] sm:$0xff]
    %v1449 = vld [vmem:[%s10 + $0x40] sm:$0xff]
    %v1450 = vld [vmem:[%s10 + $0x48] sm:$0xff]
    %v1451 = vld [vmem:[%s10 + $0x50] sm:$0xff]
    %v1452 = vld [vmem:[%s10 + $0x58] sm:$0xff]
    %v1453 = vld [vmem:[%s10 + $0x60] sm:$0xff]
    %v1454 = vld [vmem:[%s10 + $0x68] sm:$0xff]
    %v1455 = vld [vmem:[%s10 + $0x70] sm:$0xff]
    %v1456 = vld [vmem:[%s10 + $0x78] sm:$0xff]
    %1457 = vmatprep.subr.mxu0 0.0
    %1458 = vmatpush1.msra.mxu0 %v1441
    %1459 = vmatprep.subr.mxu0 0.0
    %1460 = vmatpush1.msra.mxu0 %v1442
    %1461 = vmatprep.subr.mxu0 0.0
    %1462 = vmatpush1.msra.mxu0 %v1443
    %1463 = vmatprep.subr.mxu0 0.0
    %1464 = vmatpush1.msra.mxu0 %v1444
    %1465 = vmatprep.subr.mxu0 0.0
    %1466 = vmatpush1.msra.mxu0 %v1445
    %1467 = vmatprep.subr.mxu0 0.0
    %1468 = vmatpush1.msra.mxu0 %v1446
    %1469 = vmatprep.subr.mxu0 0.0
    %1470 = vmatpush1.msra.mxu0 %v1447
    %1471 = vmatprep.subr.mxu0 0.0
    %1472 = vmatpush1.msra.mxu0 %v1448
    %1473 = vmatprep.subr.mxu0 0.0
    %1474 = vmatpush1.msra.mxu0 %v1449
    %1475 = vmatprep.subr.mxu0 0.0
    %1476 = vmatpush1.msra.mxu0 %v1450
    %1477 = vmatprep.subr.mxu0 0.0
    %1478 = vmatpush1.msra.mxu0 %v1451
    %1479 = vmatprep.subr.mxu0 0.0
    %1480 = vmatpush1.msra.mxu0 %v1452
    %1481 = vmatprep.subr.mxu0 0.0
    %1482 = vmatpush1.msra.mxu0 %v1453
    %1483 = vmatprep.subr.mxu0 0.0
    %1484 = vmatpush1.msra.mxu0 %v1454
    %1485 = vmatprep.subr.mxu0 0.0
    %1486 = vmatpush1.msra.mxu0 %v1455
    %1487 = vmatprep.subr.mxu0 0.0
    %1488 = vmatpush1.msra.mxu0 %v1456
    %1489 = vmatprep.subr.mxu0 0.0
    %1490 = vmatpush1.msra.mxu0 0.0
    %1491 = vmatprep.subr.mxu0 0.0
    %1492 = vmatpush1.msra.mxu0 0.0
    %1493 = vmatprep.subr.mxu0 0.0
    %1494 = vmatpush1.msra.mxu0 0.0
    %1495 = vmatprep.subr.mxu0 0.0
    %1496 = vmatpush1.msra.mxu0 0.0
    %1497 = vmatprep.subr.mxu0 0.0
    %1498 = vmatpush1.msra.mxu0 0.0
    %1499 = vmatprep.subr.mxu0 0.0
    %1500 = vmatpush1.msra.mxu0 0.0
    %1501 = vmatprep.subr.mxu0 0.0
    %1502 = vmatpush1.msra.mxu0 0.0
    %1503 = vmatprep.subr.mxu0 0.0
    %1504 = vmatpush1.msra.mxu0 0.0
    %1505 = vmatprep.subr.mxu0 0.0
    %1506 = vmatpush1.msra.mxu0 0.0
    %1507 = vmatprep.subr.mxu0 0.0
    %1508 = vmatpush1.msra.mxu0 0.0
    %1509 = vmatprep.subr.mxu0 0.0
    %1510 = vmatpush1.msra.mxu0 0.0
    %1511 = vmatprep.subr.mxu0 0.0
    %1512 = vmatpush1.msra.mxu0 0.0
    %1513 = vmatprep.subr.mxu0 0.0
    %1514 = vmatpush1.msra.mxu0 0.0
    %1515 = vmatprep.subr.mxu0 0.0
    %1516 = vmatpush1.msra.mxu0 0.0
    %1517 = vmatprep.subr.mxu0 0.0
    %1518 = vmatpush1.msra.mxu0 0.0
    %1519 = vmatprep.subr.mxu0 0.0
    %1520 = vmatpush1.msra.mxu0 0.0
    %1521 = vmatprep.mubr.f32.mxu0 0.0
    %1522 = vmatmul.mubr.f32.gmra.mrb[0].mxu0 %v1423
    %v1523 = vpop.f32.mrb[0].mxu0
    %v1524 = vadd.f32 0.0, %v1523
    %v1525 = vpop.f32.mrb[0].mxu0
    %1526 = vdwg.mxu0
    %1527 = vmatprep.subr.mxu0 0.0
    %1528 = vmatpush1.msra.mxu0 %v1425
    %1529 = vmatprep.subr.mxu0 0.0
    %1530 = vmatpush1.msra.mxu0 %v1426
    %1531 = vmatprep.subr.mxu0 0.0
    %1532 = vmatpush1.msra.mxu0 %v1427
    %1533 = vmatprep.subr.mxu0 0.0
    %1534 = vmatpush1.msra.mxu0 %v1428
    %1535 = vmatprep.subr.mxu0 0.0
    %1536 = vmatpush1.msra.mxu0 %v1429
    %1537 = vmatprep.subr.mxu0 0.0
    %1538 = vmatpush1.msra.mxu0 %v1430
    %1539 = vmatprep.subr.mxu0 0.0
    %1540 = vmatpush1.msra.mxu0 %v1431
    %1541 = vmatprep.subr.mxu0 0.0
    %1542 = vmatpush1.msra.mxu0 %v1432
    %1543 = vmatprep.subr.mxu0 0.0
    %1544 = vmatpush1.msra.mxu0 %v1433
    %1545 = vmatprep.subr.mxu0 0.0
    %1546 = vmatpush1.msra.mxu0 %v1434
    %1547 = vmatprep.subr.mxu0 0.0
    %1548 = vmatpush1.msra.mxu0 %v1435
    %1549 = vmatprep.subr.mxu0 0.0
    %1550 = vmatpush1.msra.mxu0 %v1436
    %1551 = vmatprep.subr.mxu0 0.0
    %1552 = vmatpush1.msra.mxu0 %v1437
    %1553 = vmatprep.subr.mxu0 0.0
    %1554 = vmatpush1.msra.mxu0 %v1438
    %1555 = vmatprep.subr.mxu0 0.0
    %1556 = vmatpush1.msra.mxu0 %v1439
    %1557 = vmatprep.subr.mxu0 0.0
    %1558 = vmatpush1.msra.mxu0 %v1440
    %1559 = vmatprep.subr.mxu0 0.0
    %1560 = vmatpush1.msra.mxu0 0.0
    %1561 = vmatprep.subr.mxu0 0.0
    %1562 = vmatpush1.msra.mxu0 0.0
    %1563 = vmatprep.subr.mxu0 0.0
    %1564 = vmatpush1.msra.mxu0 0.0
    %1565 = vmatprep.subr.mxu0 0.0
    %1566 = vmatpush1.msra.mxu0 0.0
    %1567 = vmatprep.subr.mxu0 0.0
    %1568 = vmatpush1.msra.mxu0 0.0
    %1569 = vmatprep.subr.mxu0 0.0
    %1570 = vmatpush1.msra.mxu0 0.0
    %1571 = vmatprep.subr.mxu0 0.0
    %1572 = vmatpush1.msra.mxu0 0.0
    %1573 = vmatprep.subr.mxu0 0.0
    %1574 = vmatpush1.msra.mxu0 0.0
    %1575 = vmatprep.subr.mxu0 0.0
    %1576 = vmatpush1.msra.mxu0 0.0
    %1577 = vmatprep.subr.mxu0 0.0
    %1578 = vmatpush1.msra.mxu0 0.0
    %1579 = vmatprep.subr.mxu0 0.0
    %1580 = vmatpush1.msra.mxu0 0.0
    %1581 = vmatprep.subr.mxu0 0.0
    %1582 = vmatpush1.msra.mxu0 0.0
    %1583 = vmatprep.subr.mxu0 0.0
    %1584 = vmatpush1.msra.mxu0 0.0
    %1585 = vmatprep.subr.mxu0 0.0
    %1586 = vmatpush1.msra.mxu0 0.0
    %1587 = vmatprep.subr.mxu0 0.0
    %1588 = vmatpush1.msra.mxu0 0.0
    %1589 = vmatprep.subr.mxu0 0.0
    %1590 = vmatpush1.msra.mxu0 0.0
    %1591 = vmatprep.mubr.f32.mxu0 0.0
    %1592 = vmatmul.mubr.f32.gmra.mrb[0].mxu0 %v1424
    %v1593 = vpop.f32.mrb[0].mxu0
    %v1594 = vadd.f32 %v1524, %v1593
    %v1595 = vpop.f32.mrb[0].mxu0
    %1596 = vdwg.mxu0
    %v1597 = vld [vmem:[#allocation9] sm:$0x1]
    %v1599 = vlaneseq
    %v1600 = vshrl.u32 %v1599, 7
    %v1601 = vsub.s32 0, %v1600
    %v1602 = vrot.slane %v1597, %v1601
    %v1604 = vadd.f32 %v1594, %v1602
    %v1605 = vmax.f32 %v1604, 0.0
    %v1606 = vld [vmem:[%s12] sm:$0xff]
    %v1607 = vld [vmem:[%s12 + $0x8] sm:$0xff]
    %v1608 = vld [vmem:[%s12 + $0x10] sm:$0xff]
    %v1609 = vld [vmem:[%s12 + $0x18] sm:$0xff]
    %v1610 = vld [vmem:[%s12 + $0x20] sm:$0xff]
    %v1611 = vld [vmem:[%s12 + $0x28] sm:$0xff]
    %v1612 = vld [vmem:[%s12 + $0x30] sm:$0xff]
    %v1613 = vld [vmem:[%s12 + $0x38] sm:$0xff]
    %v1614 = vld [vmem:[%s12 + $0x40] sm:$0xff]
    %v1615 = vld [vmem:[%s12 + $0x48] sm:$0xff]
    %v1616 = vld [vmem:[%s12 + $0x50] sm:$0xff]
    %v1617 = vld [vmem:[%s12 + $0x58] sm:$0xff]
    %v1618 = vld [vmem:[%s12 + $0x60] sm:$0xff]
    %v1619 = vld [vmem:[%s12 + $0x68] sm:$0xff]
    %v1620 = vld [vmem:[%s12 + $0x70] sm:$0xff]
    %v1621 = vld [vmem:[%s12 + $0x78] sm:$0xff]
    %v1622 = vld [vmem:[%s13] sm:$0x1]
    %v1624 = vlaneseq
    %v1625 = vshrl.u32 %v1624, 7
    %v1626 = vsub.s32 0, %v1625
    %v1627 = vrot.slane %v1622, %v1626
    %1629 = vmatprep.subr.mxu0 0.0
    %1630 = vmatpush1.msra.mxu0 %v1606
    %1631 = vmatprep.subr.mxu0 0.0
    %1632 = vmatpush1.msra.mxu0 %v1607
    %1633 = vmatprep.subr.mxu0 0.0
    %1634 = vmatpush1.msra.mxu0 %v1608
    %1635 = vmatprep.subr.mxu0 0.0
    %1636 = vmatpush1.msra.mxu0 %v1609
    %1637 = vmatprep.subr.mxu0 0.0
    %1638 = vmatpush1.msra.mxu0 %v1610
    %1639 = vmatprep.subr.mxu0 0.0
    %1640 = vmatpush1.msra.mxu0 %v1611
    %1641 = vmatprep.subr.mxu0 0.0
    %1642 = vmatpush1.msra.mxu0 %v1612
    %1643 = vmatprep.subr.mxu0 0.0
    %1644 = vmatpush1.msra.mxu0 %v1613
    %1645 = vmatprep.subr.mxu0 0.0
    %1646 = vmatpush1.msra.mxu0 %v1614
    %1647 = vmatprep.subr.mxu0 0.0
    %1648 = vmatpush1.msra.mxu0 %v1615
    %1649 = vmatprep.subr.mxu0 0.0
    %1650 = vmatpush1.msra.mxu0 %v1616
    %1651 = vmatprep.subr.mxu0 0.0
    %1652 = vmatpush1.msra.mxu0 %v1617
    %1653 = vmatprep.subr.mxu0 0.0
    %1654 = vmatpush1.msra.mxu0 %v1618
    %1655 = vmatprep.subr.mxu0 0.0
    %1656 = vmatpush1.msra.mxu0 %v1619
    %1657 = vmatprep.subr.mxu0 0.0
    %1658 = vmatpush1.msra.mxu0 %v1620
    %1659 = vmatprep.subr.mxu0 0.0
    %1660 = vmatpush1.msra.mxu0 %v1621
    %1661 = vmatprep.subr.mxu0 0.0
    %1662 = vmatpush1.msra.mxu0 0.0
    %1663 = vmatprep.subr.mxu0 0.0
    %1664 = vmatpush1.msra.mxu0 0.0
    %1665 = vmatprep.subr.mxu0 0.0
    %1666 = vmatpush1.msra.mxu0 0.0
    %1667 = vmatprep.subr.mxu0 0.0
    %1668 = vmatpush1.msra.mxu0 0.0
    %1669 = vmatprep.subr.mxu0 0.0
    %1670 = vmatpush1.msra.mxu0 0.0
    %1671 = vmatprep.subr.mxu0 0.0
    %1672 = vmatpush1.msra.mxu0 0.0
    %1673 = vmatprep.subr.mxu0 0.0
    %1674 = vmatpush1.msra.mxu0 0.0
    %1675 = vmatprep.subr.mxu0 0.0
    %1676 = vmatpush1.msra.mxu0 0.0
    %1677 = vmatprep.subr.mxu0 0.0
    %1678 = vmatpush1.msra.mxu0 0.0
    %1679 = vmatprep.subr.mxu0 0.0
    %1680 = vmatpush1.msra.mxu0 0.0
    %1681 = vmatprep.subr.mxu0 0.0
    %1682 = vmatpush1.msra.mxu0 0.0
    %1683 = vmatprep.subr.mxu0 0.0
    %1684 = vmatpush1.msra.mxu0 0.0
    %1685 = vmatprep.subr.mxu0 0.0
    %1686 = vmatpush1.msra.mxu0 0.0
    %1687 = vmatprep.subr.mxu0 0.0
    %1688 = vmatpush1.msra.mxu0 0.0
    %1689 = vmatprep.subr.mxu0 0.0
    %1690 = vmatpush1.msra.mxu0 0.0
    %1691 = vmatprep.subr.mxu0 0.0
    %1692 = vmatpush1.msra.mxu0 0.0
    %1693 = vmatprep.mubr.f32.mxu0 0.0
    %1694 = vmatmul.mubr.f32.gmra.mrb[0].mxu0 %v1605
    %v1695 = vpop.f32.mrb[0].mxu0
    %v1696 = vadd.f32 %v1627, %v1695
    %v1697 = vpop.f32.mrb[0].mxu0
    %1698 = vdwg.mxu0
    %v1699 = vtanh.pop %v1696
    %v1700 = vld [vmem:[%s2] sm:$0x3]
    %v1701 = vmul.f32 %v1700, 0.1
    %v1702 = vadd.f32 %v1699, %v1701
    %v1703 = vsub.f32 %v1702, %v1699
    %v1704 = vmul.f32 %v1703, %v1703
    %v1705 = vsub.f32 0.0, %v1704
    %v1706 = vrcp.pop 0.02
    %v1707 = vmul.f32 %v1705, %v1706
    %v1708 = vsub.f32 %v1707, -2.3025851
    %v1709 = vsub.f32 %v1708, 0.9189385
    %1710 = vst.msk [vmem:[#allocation11] sm:$0x3] %vm251, %v1709
    %v1711 = vld [vmem:[%s14] sm:$0xff]
    %v1712 = vld [vmem:[%s14 + $0x8] sm:$0xff]
    %v1713 = vld [vmem:[%s14 + $0x10] sm:$0xff]
    %v1714 = vld [vmem:[%s14 + $0x18] sm:$0xff]
    %v1715 = vld [vmem:[%s14 + $0x20] sm:$0xff]
    %v1716 = vld [vmem:[%s14 + $0x28] sm:$0xff]
    %v1717 = vld [vmem:[%s14 + $0x30] sm:$0xff]
    %v1718 = vld [vmem:[%s14 + $0x38] sm:$0xff]
    %v1719 = vld [vmem:[%s14 + $0x40] sm:$0xff]
    %v1720 = vld [vmem:[%s14 + $0x48] sm:$0xff]
    %v1721 = vld [vmem:[%s14 + $0x50] sm:$0xff]
    %v1722 = vld [vmem:[%s14 + $0x58] sm:$0xff]
    %v1723 = vld [vmem:[%s14 + $0x60] sm:$0xff]
    %v1724 = vld [vmem:[%s14 + $0x68] sm:$0xff]
    %v1725 = vld [vmem:[%s14 + $0x70] sm:$0xff]
    %v1726 = vld [vmem:[%s14 + $0x78] sm:$0xff]
    %v1727 = vld [vmem:[%s15] sm:$0x1]
    %v1729 = vlaneseq
    %v1730 = vshrl.u32 %v1729, 7
    %v1731 = vsub.s32 0, %v1730
    %v1732 = vrot.slane %v1727, %v1731
    %1734 = vmatprep.subr.mxu0 0.0
    %1735 = vmatpush1.msra.mxu0 %v1711
    %1736 = vmatprep.subr.mxu0 0.0
    %1737 = vmatpush1.msra.mxu0 %v1712
    %1738 = vmatprep.subr.mxu0 0.0
    %1739 = vmatpush1.msra.mxu0 %v1713
    %1740 = vmatprep.subr.mxu0 0.0
    %1741 = vmatpush1.msra.mxu0 %v1714
    %1742 = vmatprep.subr.mxu0 0.0
    %1743 = vmatpush1.msra.mxu0 %v1715
    %1744 = vmatprep.subr.mxu0 0.0
    %1745 = vmatpush1.msra.mxu0 %v1716
    %1746 = vmatprep.subr.mxu0 0.0
    %1747 = vmatpush1.msra.mxu0 %v1717
    %1748 = vmatprep.subr.mxu0 0.0
    %1749 = vmatpush1.msra.mxu0 %v1718
    %1750 = vmatprep.subr.mxu0 0.0
    %1751 = vmatpush1.msra.mxu0 %v1719
    %1752 = vmatprep.subr.mxu0 0.0
    %1753 = vmatpush1.msra.mxu0 %v1720
    %1754 = vmatprep.subr.mxu0 0.0
    %1755 = vmatpush1.msra.mxu0 %v1721
    %1756 = vmatprep.subr.mxu0 0.0
    %1757 = vmatpush1.msra.mxu0 %v1722
    %1758 = vmatprep.subr.mxu0 0.0
    %1759 = vmatpush1.msra.mxu0 %v1723
    %1760 = vmatprep.subr.mxu0 0.0
    %1761 = vmatpush1.msra.mxu0 %v1724
    %1762 = vmatprep.subr.mxu0 0.0
    %1763 = vmatpush1.msra.mxu0 %v1725
    %1764 = vmatprep.subr.mxu0 0.0
    %1765 = vmatpush1.msra.mxu0 %v1726
    %1766 = vmatprep.subr.mxu0 0.0
    %1767 = vmatpush1.msra.mxu0 0.0
    %1768 = vmatprep.subr.mxu0 0.0
    %1769 = vmatpush1.msra.mxu0 0.0
    %1770 = vmatprep.subr.mxu0 0.0
    %1771 = vmatpush1.msra.mxu0 0.0
    %1772 = vmatprep.subr.mxu0 0.0
    %1773 = vmatpush1.msra.mxu0 0.0
    %1774 = vmatprep.subr.mxu0 0.0
    %1775 = vmatpush1.msra.mxu0 0.0
    %1776 = vmatprep.subr.mxu0 0.0
    %1777 = vmatpush1.msra.mxu0 0.0
    %1778 = vmatprep.subr.mxu0 0.0
    %1779 = vmatpush1.msra.mxu0 0.0
    %1780 = vmatprep.subr.mxu0 0.0
    %1781 = vmatpush1.msra.mxu0 0.0
    %1782 = vmatprep.subr.mxu0 0.0
    %1783 = vmatpush1.msra.mxu0 0.0
    %1784 = vmatprep.subr.mxu0 0.0
    %1785 = vmatpush1.msra.mxu0 0.0
    %1786 = vmatprep.subr.mxu0 0.0
    %1787 = vmatpush1.msra.mxu0 0.0
    %1788 = vmatprep.subr.mxu0 0.0
    %1789 = vmatpush1.msra.mxu0 0.0
    %1790 = vmatprep.subr.mxu0 0.0
    %1791 = vmatpush1.msra.mxu0 0.0
    %1792 = vmatprep.subr.mxu0 0.0
    %1793 = vmatpush1.msra.mxu0 0.0
    %1794 = vmatprep.subr.mxu0 0.0
    %1795 = vmatpush1.msra.mxu0 0.0
    %1796 = vmatprep.subr.mxu0 0.0
    %1797 = vmatpush1.msra.mxu0 0.0
    %1798 = vmatprep.mubr.f32.mxu0 0.0
    %1799 = vmatmul.mubr.f32.gmra.mrb[0].mxu0 %v1605
    %v1800 = vpop.f32.mrb[0].mxu0
    %v1801 = vadd.f32 %v1732, %v1800
    %v1802 = vpop.f32.mrb[0].mxu0
    %1803 = vdwg.mxu0
    %v1804 = vld [vmem:[%s16] sm:$0xff]
    %v1805 = vld [vmem:[%s16 + $0x8] sm:$0xff]
    %v1806 = vld [vmem:[%s16 + $0x10] sm:$0xff]
    %v1807 = vld [vmem:[%s16 + $0x18] sm:$0xff]
    %v1808 = vld [vmem:[#allocation2] sm:$0x1]
    %v1810 = vlaneseq
    %v1811 = vshrl.u32 %v1810, 7
    %v1812 = vsub.s32 0, %v1811
    %v1813 = vrot.slane %v1808, %v1812
    %vm1815 = vcmask 261120
    %v1817 = vsel %vm1815, %v1801, 0
    %1819 = vmatprep.subr.mxu0 0.0
    %1820 = vmatpush1.msra.mxu0 %v1804
    %1821 = vmatprep.subr.mxu0 0.0
    %1822 = vmatpush1.msra.mxu0 %v1805
    %1823 = vmatprep.subr.mxu0 0.0
    %1824 = vmatpush1.msra.mxu0 %v1806
    %1825 = vmatprep.subr.mxu0 0.0
    %1826 = vmatpush1.msra.mxu0 %v1807
    %1827 = vmatprep.subr.mxu0 0.0
    %1828 = vmatpush1.msra.mxu0 0.0
    %1829 = vmatprep.subr.mxu0 0.0
    %1830 = vmatpush1.msra.mxu0 0.0
    %1831 = vmatprep.subr.mxu0 0.0
    %1832 = vmatpush1.msra.mxu0 0.0
    %1833 = vmatprep.subr.mxu0 0.0
    %1834 = vmatpush1.msra.mxu0 0.0
    %1835 = vmatprep.subr.mxu0 0.0
    %1836 = vmatpush1.msra.mxu0 0.0
    %1837 = vmatprep.subr.mxu0 0.0
    %1838 = vmatpush1.msra.mxu0 0.0
    %1839 = vmatprep.subr.mxu0 0.0
    %1840 = vmatpush1.msra.mxu0 0.0
    %1841 = vmatprep.subr.mxu0 0.0
    %1842 = vmatpush1.msra.mxu0 0.0
    %1843 = vmatprep.subr.mxu0 0.0
    %1844 = vmatpush1.msra.mxu0 0.0
    %1845 = vmatprep.subr.mxu0 0.0
    %1846 = vmatpush1.msra.mxu0 0.0
    %1847 = vmatprep.subr.mxu0 0.0
    %1848 = vmatpush1.msra.mxu0 0.0
    %1849 = vmatprep.subr.mxu0 0.0
    %1850 = vmatpush1.msra.mxu0 0.0
    %1851 = vmatprep.subr.mxu0 0.0
    %1852 = vmatpush1.msra.mxu0 0.0
    %1853 = vmatprep.subr.mxu0 0.0
    %1854 = vmatpush1.msra.mxu0 0.0
    %1855 = vmatprep.subr.mxu0 0.0
    %1856 = vmatpush1.msra.mxu0 0.0
    %1857 = vmatprep.subr.mxu0 0.0
    %1858 = vmatpush1.msra.mxu0 0.0
    %1859 = vmatprep.subr.mxu0 0.0
    %1860 = vmatpush1.msra.mxu0 0.0
    %1861 = vmatprep.subr.mxu0 0.0
    %1862 = vmatpush1.msra.mxu0 0.0
    %1863 = vmatprep.subr.mxu0 0.0
    %1864 = vmatpush1.msra.mxu0 0.0
    %1865 = vmatprep.subr.mxu0 0.0
    %1866 = vmatpush1.msra.mxu0 0.0
    %1867 = vmatprep.subr.mxu0 0.0
    %1868 = vmatpush1.msra.mxu0 0.0
    %1869 = vmatprep.subr.mxu0 0.0
    %1870 = vmatpush1.msra.mxu0 0.0
    %1871 = vmatprep.subr.mxu0 0.0
    %1872 = vmatpush1.msra.mxu0 0.0
    %1873 = vmatprep.subr.mxu0 0.0
    %1874 = vmatpush1.msra.mxu0 0.0
    %1875 = vmatprep.subr.mxu0 0.0
    %1876 = vmatpush1.msra.mxu0 0.0
    %1877 = vmatprep.subr.mxu0 0.0
    %1878 = vmatpush1.msra.mxu0 0.0
    %1879 = vmatprep.subr.mxu0 0.0
    %1880 = vmatpush1.msra.mxu0 0.0
    %1881 = vmatprep.subr.mxu0 0.0
    %1882 = vmatpush1.msra.mxu0 0.0
    %1883 = vmatprep.mubr.f32.mxu0 0.0
    %1884 = vmatmul.mubr.f32.gmra.mrb[0].mxu0 %v1817
    %v1885 = vpop.f32.mrb[0].mxu0
    %v1886 = vadd.f32 %v1813, %v1885
    %v1887 = vpop.f32.mrb[0].mxu0
    %1888 = vdwg.mxu0
    %vm1889 = vcmask 1024
    %1890 = vst.msk [vmem:[%s19] sm:$0x3] %vm1889, %v1886
    // Predicated region
    $region90: #{_lambda_.1} parent=1 // pred_check
      _
    $region91: #{_lambda_.1} parent=1 // pred_check_branch
      %1892 = sbr.rel (0) target = $region93
    $region92: #{_lambda_.1} parent=1 // pred_region
      %s1894 = ssub.s32 32, 32
      %1895 = vsyncadd [#allocation5], %s1894
      %s1897 = sshll.u32 [#allocation11], 4
      %s1898 = int_to_ptr.vmem [resolvable:$true] %s1897
      %1900 = dma.vmem_to_hbm [thread:$0]  %s1898, 32, %s18, [#allocation5]
    $region93: #{_lambda_.1} parent=1 // pred_fallthru
      _
    // Predicated region
    $region94: #{_lambda_.1} parent=1 // pred_check
      _
    $region95: #{_lambda_.1} parent=1 // pred_check_branch
      %1902 = sbr.rel (0) target = $region97
    $region96: #{_lambda_.1} parent=1 // pred_region
      _
    $region97: #{_lambda_.1} parent=1 // pred_fallthru
      _
    // Predicated region
    $region98: #{_lambda_.1} parent=1 // pred_check
      _
    $region99: #{_lambda_.1} parent=1 // pred_check_branch
      %1904 = sbr.rel (0) target = $region101
    $region100: #{_lambda_.1} parent=1 // pred_region
      %1905 = dma.done [#allocation5], 32
    $region101: #{_lambda_.1} parent=1 // pred_fallthru
      _
    // Predicated region
    $region102: #{_lambda_.1} parent=1 // pred_check
      _
    $region103: #{_lambda_.1} parent=1 // pred_check_branch
      %1907 = sbr.rel (0) target = $region105
    $region104: #{_lambda_.1} parent=1 // pred_region
      _
    $region105: #{_lambda_.1} parent=1 // pred_fallthru
      _
    %1908 = vsyncpa [#allocation4], 1
    %1909 = vsyncpa [#allocation7], 1
    %1910 = vsyncpa [#allocation10], 1
    %1911 = vsyncpa [#allocation5], 1

</llo_original>
